<compile_context>
chip_gen: v6e
topology: v6e:2x2x1
jax: 0.10.0
libtpu: 0.0.40
codegen_flags: <defaults>
</compile_context>

<pallas_src>
import functools
import math

import jax
import jax.numpy as jnp
from jax.experimental import pallas as pl
from jax.experimental.pallas import tpu as pltpu


# ----------------------------------------------------------------------------
# In-kernel helpers
# ----------------------------------------------------------------------------
def _layer_norm(z, gamma, beta, eps=1e-3):
    """torch-style LayerNormalization: (z - mu) / (unbiased_std + eps) * g + b."""
    d = z.shape[-1]
    mu = jnp.mean(z, axis=-1, keepdims=True)
    # torch .std() default is unbiased (divide by n-1)
    var = jnp.sum((z - mu) ** 2, axis=-1, keepdims=True) * (1.0 / (d - 1))
    return (z - mu) / (jnp.sqrt(var) + eps) * gamma + beta   # exact divide


def _pick_tile(n, target, mult):
    """Largest divisor of n that is <= target and a multiple of `mult`;
    falls back to the full dimension (always a legal BlockSpec block)."""
    if n <= target:
        return n
    t = (min(target, n) // mult) * mult
    while t >= mult:
        if n % t == 0:
            return t
        t -= mult
    return n


# ----------------------------------------------------------------------------
# Kernels
# ----------------------------------------------------------------------------
def _mha_fused_kernel(q_ref, k_ref, v_ref, mask_ref, wq_ref, wk_ref, wv_ref,
                      projw_ref, gamma_ref, beta_ref, out_ref, attn_ref, *,
                      n_head):
    """One (batch, q-tile) step: fused all-head QKV projection, head-batched
    attention, head-major output projection, residual add and LayerNorm."""
    q = q_ref[...]                       # (q_tile, d_model) f32 — also the residual
    k = k_ref[...]                       # (len_k, d_model)
    v = v_ref[...]                       # (len_k, d_model)

    len_q = q.shape[0]
    len_k = k.shape[0]
    hdk = wq_ref.shape[1]
    d_k = hdk // n_head

    # Fused lane-dense projections: one MXU matmul covers all heads.
    qs = jnp.dot(q.astype(jnp.bfloat16), wq_ref[...],
                 preferred_element_type=jnp.float32)          # (q_tile, H*dk)
    ks = jnp.dot(k.astype(jnp.bfloat16), wk_ref[...],
                 preferred_element_type=jnp.float32)          # (len_k, H*dk)
    vs = jnp.dot(v.astype(jnp.bfloat16), wv_ref[...],
                 preferred_element_type=jnp.float32)          # (len_k, H*dk)

    # Head-major reshape (one relayout each) instead of 2*H lane slices + concat;
    # drop the f32 copies immediately after.
    qh = qs.reshape(len_q, n_head, d_k).transpose(1, 0, 2).astype(jnp.bfloat16)
    kh = ks.reshape(len_k, n_head, d_k).transpose(1, 0, 2).astype(jnp.bfloat16)
    vh = vs.reshape(len_k, n_head, d_k).transpose(1, 0, 2).astype(jnp.bfloat16)

    # Head-batched score matmul; in-kernel mask -> -1e9 expansion (mask is int8).
    scale = jnp.float32(1.0 / math.sqrt(d_k))
    scores = jnp.einsum('hqd,hkd->hqk', qh, kh,
                        preferred_element_type=jnp.float32)   # (H, q_tile, len_k)
    neg = mask_ref[...].astype(jnp.float32) * jnp.float32(-1e9)
    scores = scores * scale + neg[None]

    m = jnp.max(scores, axis=-1, keepdims=True)
    e = jnp.exp(scores - m)
    p = e * pl.reciprocal(jnp.sum(e, axis=-1, keepdims=True), approx=True)  # EUP
    attn_ref[...] = p                                          # (H, q_tile, len_k)

    o = jnp.einsum('hqk,hkd->hqd', p.astype(jnp.bfloat16), vh,
                   preferred_element_type=jnp.float32)         # (H, q_tile, dk)

    # Output projection with head-major weight (H, dk, d_model): per-head partial
    # projections summed over heads — no concat / lane re-slicing.
    part = jnp.einsum('hqd,hdm->hqm', o.astype(jnp.bfloat16), projw_ref[...],
                      preferred_element_type=jnp.float32)      # (H, q_tile, d_model)
    y = jnp.sum(part, axis=0)                                  # (q_tile, d_model)

    out_ref[...] = _layer_norm(y + q, gamma_ref[...], beta_ref[...])


def _ffn_kernel(x_ref, w1t_ref, b1_ref, w2t_ref, b2_ref, gamma_ref, beta_ref,
                o_ref, acc_ref):
    """Positionwise FFN on a (seq_tile, d_model) block with the d_inner axis
    streamed: acc += relu(x@W1tile + b1tile) @ W2tile, finalize with residual+LN."""
    ki = pl.program_id(2)

    @pl.when(ki == 0)
    def _():
        acc_ref[...] = jnp.zeros_like(acc_ref)

    x = x_ref[...]                                            # (tile_s, d_model) f32
    h = jnp.dot(x.astype(jnp.bfloat16), w1t_ref[...],
                preferred_element_type=jnp.float32) + b1_ref[...]
    h = jnp.maximum(h, 0.0)
    acc_ref[...] += jnp.dot(h.astype(jnp.bfloat16), w2t_ref[...],
                            preferred_element_type=jnp.float32)

    @pl.when(ki == pl.num_programs(2) - 1)
    def _():
        z = acc_ref[...] + b2_ref[...] + x                    # bias + residual
        o_ref[...] = _layer_norm(z, gamma_ref[...], beta_ref[...])


# ----------------------------------------------------------------------------
# Wrappers
# ----------------------------------------------------------------------------
def multi_head_attention(q, k, v, attn_mask, params, *, q_tile=256):
    """q,k,v: [bsz, len, d_model]; attn_mask: [bsz, len_q, len_k], nonzero = masked.
    Returns (output [bsz, len_q, d_model], attns [n_head*bsz, len_q, len_k])."""
    bsz, len_q, d_model = q.shape
    _, len_k, _ = k.shape
    n_head = params["n_head"]
    hdk = params["w_q_cat"].shape[1]     # n_head * d_k
    d_k = hdk // n_head

    # 1-byte mask, expanded to -1e9 in-kernel (no f32 bias materialized in HBM).
    mask_i8 = (attn_mask != 0).astype(jnp.int8)

    # q-tile multiple of 32 keeps the int8 mask block legal at large shapes.
    tq = _pick_tile(len_q, q_tile, mult=32)
    n_q = len_q // tq

    out, attns = pl.pallas_call(
        functools.partial(_mha_fused_kernel, n_head=n_head),
        out_shape=(
            jax.ShapeDtypeStruct((bsz, len_q, d_model), jnp.float32),
            jax.ShapeDtypeStruct((n_head, bsz, len_q, len_k), jnp.float32),
        ),
        grid_spec=pltpu.PrefetchScalarGridSpec(
            num_scalar_prefetch=0,
            grid=(bsz, n_q),
            in_specs=[
                pl.BlockSpec((None, tq, d_model), lambda b, qi: (b, qi, 0)),
                pl.BlockSpec((None, len_k, d_model), lambda b, qi: (b, 0, 0)),
                pl.BlockSpec((None, len_k, d_model), lambda b, qi: (b, 0, 0)),
                pl.BlockSpec((None, tq, len_k), lambda b, qi: (b, qi, 0)),
                pl.BlockSpec((d_model, hdk), lambda b, qi: (0, 0)),
                pl.BlockSpec((d_model, hdk), lambda b, qi: (0, 0)),
                pl.BlockSpec((d_model, hdk), lambda b, qi: (0, 0)),
                pl.BlockSpec((n_head, d_k, d_model), lambda b, qi: (0, 0, 0)),
                pl.BlockSpec((1, d_model), lambda b, qi: (0, 0)),
                pl.BlockSpec((1, d_model), lambda b, qi: (0, 0)),
            ],
            out_specs=[
                pl.BlockSpec((None, tq, d_model), lambda b, qi: (b, qi, 0)),
                pl.BlockSpec((n_head, None, tq, len_k),
                             lambda b, qi: (0, b, qi, 0)),
            ],
        ),
        compiler_params=pltpu.CompilerParams(
            dimension_semantics=("parallel", "parallel")),
    )(q, k, v, mask_i8, params["w_q_cat"], params["w_k_cat"], params["w_v_cat"],
      params["proj_w_h"], params["ln_gamma"], params["ln_beta"])

    # torch returns attns as [n_head*bsz, len_q, len_k] (head-major)
    attns_flat = attns.reshape(n_head * bsz, len_q, len_k)
    return out, attns_flat


def positionwise_feed_forward(x, params, *, seq_tile=256, inner_tile=2048):
    """x: [bsz, seq, d_model] -> [bsz, seq, d_model]."""
    bsz, seq, d_model = x.shape
    d_inner = params["w1t"].shape[1]

    ts = _pick_tile(seq, seq_tile, mult=8)          # seq tile (parallel)
    ti = _pick_tile(d_inner, inner_tile, mult=128)  # d_inner streamed (arbitrary)
    n_s = seq // ts
    n_i = d_inner // ti

    return pl.pallas_call(
        _ffn_kernel,
        out_shape=jax.ShapeDtypeStruct((bsz, seq, d_model), jnp.float32),
        grid_spec=pltpu.PrefetchScalarGridSpec(
            num_scalar_prefetch=0,
            grid=(bsz, n_s, n_i),
            in_specs=[
                pl.BlockSpec((None, ts, d_model), lambda b, s, k: (b, s, 0)),
                pl.BlockSpec((d_model, ti), lambda b, s, k: (0, k)),
                pl.BlockSpec((1, ti), lambda b, s, k: (0, k)),
                pl.BlockSpec((ti, d_model), lambda b, s, k: (k, 0)),
                pl.BlockSpec((1, d_model), lambda b, s, k: (0, 0)),
                pl.BlockSpec((1, d_model), lambda b, s, k: (0, 0)),
                pl.BlockSpec((1, d_model), lambda b, s, k: (0, 0)),
            ],
            out_specs=pl.BlockSpec((None, ts, d_model),
                                   lambda b, s, k: (b, s, 0)),
            scratch_shapes=[pltpu.VMEM((ts, d_model), jnp.float32)],
        ),
        compiler_params=pltpu.CompilerParams(
            dimension_semantics=("parallel", "parallel", "arbitrary")),
    )(x, params["w1t"], params["b1"], params["w2t"], params["b2"],
      params["ln_gamma"], params["ln_beta"])


def decoder_layer(dec_input, enc_output, slf_attn_mask, dec_enc_attn_mask,
                  params):
    dec_out, dec_slf_attn = multi_head_attention(
        dec_input, dec_input, dec_input, slf_attn_mask, params["slf_attn"])
    dec_out, dec_enc_attn = multi_head_attention(
        dec_out, enc_output, enc_output, dec_enc_attn_mask, params["enc_attn"])
    dec_out = positionwise_feed_forward(dec_out, params["pos_ffn"])
    return dec_out, dec_slf_attn, dec_enc_attn


# ----------------------------------------------------------------------------
# Deterministic parameter init (xavier-normal-style, synthetic)
# ----------------------------------------------------------------------------
def _xavier_normal(key, shape, fan_in, fan_out):
    std = math.sqrt(2.0 / (fan_in + fan_out))
    return std * jax.random.normal(key, shape, dtype=jnp.float32)


def init_mha_params(key, n_head, d_model):
    d_k = d_model // n_head
    ks = jax.random.split(key, 4)

    def stack(w):  # (n_head, d_model, d_k) -> (d_model, n_head*d_k), head-major cols
        return jnp.transpose(w, (1, 0, 2)).reshape(d_model, n_head * d_k)

    w_qs = _xavier_normal(ks[0], (n_head, d_model, d_k), d_model * d_k, n_head * d_k)
    w_ks = _xavier_normal(ks[1], (n_head, d_model, d_k), d_model * d_k, n_head * d_k)
    w_vs = _xavier_normal(ks[2], (n_head, d_model, d_k), d_model * d_k, n_head * d_k)
    proj_w = _xavier_normal(ks[3], (d_model, d_model), d_model, d_model)
    # y = concat_headmajor @ W^T  ->  head-major slabs of W^T: (H, d_k, d_model)
    proj_w_h = proj_w.T.reshape(n_head, d_k, d_model)
    return dict(
        n_head=n_head,
        w_q_cat=stack(w_qs).astype(jnp.bfloat16),
        w_k_cat=stack(w_ks).astype(jnp.bfloat16),
        w_v_cat=stack(w_vs).astype(jnp.bfloat16),
        proj_w_h=proj_w_h.astype(jnp.bfloat16),
        ln_gamma=jnp.ones((1, d_model), jnp.float32),
        ln_beta=jnp.zeros((1, d_model), jnp.float32),
    )


def init_ffn_params(key, d_model, d_inner):
    ks = jax.random.split(key, 4)
    w1 = _xavier_normal(ks[0], (d_inner, d_model), d_model, d_inner)  # Conv1d(d_model->d_inner, 1)
    b1 = 0.01 * jax.random.normal(ks[1], (d_inner,), jnp.float32)
    w2 = _xavier_normal(ks[2], (d_model, d_inner), d_inner, d_model)  # Conv1d(d_inner->d_model, 1)
    b2 = 0.01 * jax.random.normal(ks[3], (d_model,), jnp.float32)
    return dict(
        w1t=w1.T.astype(jnp.bfloat16), b1=b1.reshape(1, d_inner),
        w2t=w2.T.astype(jnp.bfloat16), b2=b2.reshape(1, d_model),
        ln_gamma=jnp.ones((1, d_model), jnp.float32),
        ln_beta=jnp.zeros((1, d_model), jnp.float32),
    )


def init_decoder_layer_params(key, d_model, d_inner, n_head):
    k1, k2, k3 = jax.random.split(key, 3)
    return dict(
        slf_attn=init_mha_params(k1, n_head, d_model),
        enc_attn=init_mha_params(k2, n_head, d_model),
        pos_ffn=init_ffn_params(k3, d_model, d_inner),
    )


# ----------------------------------------------------------------------------
# Main
# ----------------------------------------------------------------------------
if __name__ == "__main__":
    # Small shapes consistent with the module.
    bsz, seq_dec, seq_enc = 2, 8, 8
    d_model, d_inner, n_head = 32, 64, 4

    key = jax.random.PRNGKey(0)
    kx, ke, kp = jax.random.split(key, 3)

    dec_input = jax.random.normal(kx, (bsz, seq_dec, d_model), jnp.float32)
    enc_output = jax.random.normal(ke, (bsz, seq_enc, d_model), jnp.float32)

    # Self-attention mask: causal (nonzero = masked future position).
    causal = jnp.triu(jnp.ones((seq_dec, seq_dec), jnp.float32), k=1)
    slf_attn_mask = jnp.broadcast_to(causal, (bsz, seq_dec, seq_dec))
    # Dec-enc mask: no masking.
    dec_enc_attn_mask = jnp.zeros((bsz, seq_dec, seq_enc), jnp.float32)

    params = init_decoder_layer_params(kp, d_model, d_inner, n_head)

    # TODO(synk): dropout layers are identity here (no RNG-driven dropout in kernel).
    dec_out, dec_slf_attn, dec_enc_attn = decoder_layer(
        dec_input, enc_output, slf_attn_mask, dec_enc_attn_mask, params)

    jax.block_until_ready((dec_out, dec_slf_attn, dec_enc_attn))

    assert dec_out.shape == (bsz, seq_dec, d_model)
    assert dec_slf_attn.shape == (n_head * bsz, seq_dec, seq_dec)
    assert dec_enc_attn.shape == (n_head * bsz, seq_dec, seq_enc)
    assert bool(jnp.all(jnp.isfinite(dec_out)))
    assert bool(jnp.all(jnp.isfinite(dec_slf_attn)))
    assert bool(jnp.all(jnp.isfinite(dec_enc_attn)))
    # causal rows of the self-attn probs should sum ~1 (approx-reciprocal softmax)
    assert bool(jnp.all(jnp.abs(jnp.sum(dec_slf_attn, axis=-1) - 1.0) < 1e-2))

    print("KERNEL_OK")
</pallas_src>

<mosaic_0001>
module attributes {stable_mosaic.version = 11 : i64} {
  func.func @_mha_fused_kernel(%arg0: i32, %arg1: i32, %arg2: memref<1x8x32xf32, #tpu.memory_space<vmem>>, %arg3: memref<1x8x32xf32, #tpu.memory_space<vmem>>, %arg4: memref<1x8x32xf32, #tpu.memory_space<vmem>>, %arg5: memref<1x8x8xi8, #tpu.memory_space<vmem>>, %arg6: memref<32x32xbf16, #tpu.memory_space<vmem>>, %arg7: memref<32x32xbf16, #tpu.memory_space<vmem>>, %arg8: memref<32x32xbf16, #tpu.memory_space<vmem>>, %arg9: memref<4x8x32xbf16, #tpu.memory_space<vmem>>, %arg10: memref<1x32xf32, #tpu.memory_space<vmem>>, %arg11: memref<1x32xf32, #tpu.memory_space<vmem>>, %arg12: memref<1x8x32xf32, #tpu.memory_space<vmem>>, %arg13: memref<4x1x8x8xf32, #tpu.memory_space<vmem>>) attributes {dimension_semantics = [#tpu.dimension_semantics<parallel>, #tpu.dimension_semantics<parallel>], iteration_bounds = array<i64: 2, 1>, scalar_prefetch = 0 : i64, scratch_operands = 0 : i64, tpu.core_type = #tpu.core_type<tc>, window_params = [{transform_indices = @transform_0, window_bounds = array<i64: 1, 8, 32>}, {transform_indices = @transform_1, window_bounds = array<i64: 1, 8, 32>}, {transform_indices = @transform_2, window_bounds = array<i64: 1, 8, 32>}, {transform_indices = @transform_3, window_bounds = array<i64: 1, 8, 8>}, {pipeline_mode = #tpu.pipeline_mode<synchronous>, transform_indices = @transform_4, window_bounds = array<i64: 32, 32>}, {pipeline_mode = #tpu.pipeline_mode<synchronous>, transform_indices = @transform_5, window_bounds = array<i64: 32, 32>}, {pipeline_mode = #tpu.pipeline_mode<synchronous>, transform_indices = @transform_6, window_bounds = array<i64: 32, 32>}, {pipeline_mode = #tpu.pipeline_mode<synchronous>, transform_indices = @transform_7, window_bounds = array<i64: 4, 8, 32>}, {pipeline_mode = #tpu.pipeline_mode<synchronous>, transform_indices = @transform_8, window_bounds = array<i64: 1, 32>}, {pipeline_mode = #tpu.pipeline_mode<synchronous>, transform_indices = @transform_9, window_bounds = array<i64: 1, 32>}, {transform_indices = @transform_10, window_bounds = array<i64: 1, 8, 32>}, {transform_indices = @transform_11, window_bounds = array<i64: 4, 1, 8, 8>}]} {
    %c0 = arith.constant 0 : index
    %c0_0 = arith.constant 0 : index
    %c0_1 = arith.constant 0 : index
    %0 = vector.load %arg2[%c0, %c0_0, %c0_1] : memref<1x8x32xf32, #tpu.memory_space<vmem>>, vector<1x8x32xf32>
    %1 = vector.shape_cast %0 : vector<1x8x32xf32> to vector<8x32xf32>
    %c0_2 = arith.constant 0 : index
    %c0_3 = arith.constant 0 : index
    %c0_4 = arith.constant 0 : index
    %2 = vector.load %arg3[%c0_2, %c0_3, %c0_4] : memref<1x8x32xf32, #tpu.memory_space<vmem>>, vector<1x8x32xf32>
    %3 = vector.shape_cast %2 : vector<1x8x32xf32> to vector<8x32xf32>
    %c0_5 = arith.constant 0 : index
    %c0_6 = arith.constant 0 : index
    %c0_7 = arith.constant 0 : index
    %4 = vector.load %arg4[%c0_5, %c0_6, %c0_7] : memref<1x8x32xf32, #tpu.memory_space<vmem>>, vector<1x8x32xf32>
    %5 = vector.shape_cast %4 : vector<1x8x32xf32> to vector<8x32xf32>
    %6 = arith.truncf %1 : vector<8x32xf32> to vector<8x32xbf16>
    %c0_8 = arith.constant 0 : index
    %c0_9 = arith.constant 0 : index
    %7 = vector.load %arg6[%c0_8, %c0_9] : memref<32x32xbf16, #tpu.memory_space<vmem>>, vector<32x32xbf16>
    %cst = arith.constant dense<0.000000e+00> : vector<8x32xf32>
    %8 = tpu.matmul %6, %7, %cst {dimension_numbers = #tpu.dot_dimension_numbers<[1], [0], [0], [1], [0, 0, 1, 1], [], []>} : vector<8x32xbf16>, vector<32x32xbf16>, vector<8x32xf32> -> vector<8x32xf32>
    %9 = arith.truncf %3 : vector<8x32xf32> to vector<8x32xbf16>
    %c0_10 = arith.constant 0 : index
    %c0_11 = arith.constant 0 : index
    %10 = vector.load %arg7[%c0_10, %c0_11] : memref<32x32xbf16, #tpu.memory_space<vmem>>, vector<32x32xbf16>
    %cst_12 = arith.constant dense<0.000000e+00> : vector<8x32xf32>
    %11 = tpu.matmul %9, %10, %cst_12 {dimension_numbers = #tpu.dot_dimension_numbers<[1], [0], [0], [1], [0, 0, 1, 1], [], []>} : vector<8x32xbf16>, vector<32x32xbf16>, vector<8x32xf32> -> vector<8x32xf32>
    %12 = arith.truncf %5 : vector<8x32xf32> to vector<8x32xbf16>
    %c0_13 = arith.constant 0 : index
    %c0_14 = arith.constant 0 : index
    %13 = vector.load %arg8[%c0_13, %c0_14] : memref<32x32xbf16, #tpu.memory_space<vmem>>, vector<32x32xbf16>
    %cst_15 = arith.constant dense<0.000000e+00> : vector<8x32xf32>
    %14 = tpu.matmul %12, %13, %cst_15 {dimension_numbers = #tpu.dot_dimension_numbers<[1], [0], [0], [1], [0, 0, 1, 1], [], []>} : vector<8x32xbf16>, vector<32x32xbf16>, vector<8x32xf32> -> vector<8x32xf32>
    %15 = vector.shape_cast %8 : vector<8x32xf32> to vector<8x4x8xf32>
    %16 = tpu.transpose %15, [1, 0, 2] : vector<8x4x8xf32> -> vector<4x8x8xf32>
    %17 = arith.truncf %16 : vector<4x8x8xf32> to vector<4x8x8xbf16>
    %18 = vector.shape_cast %11 : vector<8x32xf32> to vector<8x4x8xf32>
    %19 = tpu.transpose %18, [1, 0, 2] : vector<8x4x8xf32> -> vector<4x8x8xf32>
    %20 = arith.truncf %19 : vector<4x8x8xf32> to vector<4x8x8xbf16>
    %21 = vector.shape_cast %14 : vector<8x32xf32> to vector<8x4x8xf32>
    %22 = tpu.transpose %21, [1, 0, 2] : vector<8x4x8xf32> -> vector<4x8x8xf32>
    %23 = arith.truncf %22 : vector<4x8x8xf32> to vector<4x8x8xbf16>
    "tpu.trace_start"() <{level = 10 : i32, message = "hqd,hkd->hqk"}> : () -> ()
    %cst_16 = arith.constant dense<0.000000e+00> : vector<4x8x8xf32>
    %24 = tpu.matmul %17, %20, %cst_16 {dimension_numbers = #tpu.dot_dimension_numbers<[2], [2], [1], [1], [0, 0, 0, 1, 1, 1], [0], [0]>} : vector<4x8x8xbf16>, vector<4x8x8xbf16>, vector<4x8x8xf32> -> vector<4x8x8xf32>
    "tpu.trace_stop"() : () -> ()
    %c0_17 = arith.constant 0 : index
    %c0_18 = arith.constant 0 : index
    %c0_19 = arith.constant 0 : index
    %25 = vector.load %arg5[%c0_17, %c0_18, %c0_19] : memref<1x8x8xi8, #tpu.memory_space<vmem>>, vector<1x8x8xi8>
    %26 = vector.shape_cast %25 : vector<1x8x8xi8> to vector<8x8xi8>
    %27 = arith.sitofp %26 : vector<8x8xi8> to vector<8x8xf32>
    %cst_20 = arith.constant -1.000000e+09 : f32
    %28 = vector.broadcast %cst_20 : f32 to vector<8x8xf32>
    %29 = arith.mulf %27, %28 : vector<8x8xf32>
    %cst_21 = arith.constant 0.353553385 : f32
    %30 = vector.broadcast %cst_21 : f32 to vector<4x8x8xf32>
    %31 = arith.mulf %24, %30 : vector<4x8x8xf32>
    %32 = vector.shape_cast %29 : vector<8x8xf32> to vector<1x8x8xf32>
    %33 = vector.broadcast %32 : vector<1x8x8xf32> to vector<4x8x8xf32>
    %34 = arith.addf %31, %33 : vector<4x8x8xf32>
    %cst_22 = arith.constant dense<0xFF800000> : vector<4x8xf32>
    %35 = vector.multi_reduction <maximumf>, %34, %cst_22 [2] : vector<4x8x8xf32> to vector<4x8xf32>
    %36 = vector.shape_cast %35 : vector<4x8xf32> to vector<4x8x1xf32>
    %37 = vector.broadcast %36 : vector<4x8x1xf32> to vector<4x8x8xf32>
    %38 = arith.subf %34, %37 : vector<4x8x8xf32>
    %39 = math.exp %38 : vector<4x8x8xf32>
    %cst_23 = arith.constant dense<0.000000e+00> : vector<4x8xf32>
    %40 = vector.multi_reduction <add>, %39, %cst_23 [2] : vector<4x8x8xf32> to vector<4x8xf32>
    %41 = vector.shape_cast %40 : vector<4x8xf32> to vector<4x8x1xf32>
    %42 = tpu.reciprocal %41 {approx = true} : vector<4x8x1xf32> -> vector<4x8x1xf32>
    %43 = vector.broadcast %42 : vector<4x8x1xf32> to vector<4x8x8xf32>
    %44 = arith.mulf %39, %43 : vector<4x8x8xf32>
    %c0_24 = arith.constant 0 : index
    %c0_25 = arith.constant 0 : index
    %c0_26 = arith.constant 0 : index
    %c0_27 = arith.constant 0 : index
    %45 = vector.load %arg13[%c0_24, %c0_25, %c0_26, %c0_27] : memref<4x1x8x8xf32, #tpu.memory_space<vmem>>, vector<4x1x8x8xf32>
    %46 = vector.shape_cast %45 : vector<4x1x8x8xf32> to vector<4x8x8xf32>
    %47 = vector.shape_cast %44 : vector<4x8x8xf32> to vector<4x1x8x8xf32>
    tpu.vector_store %arg13[%c0_24, %c0_25, %c0_26, %c0_27], %47 {strides = array<i32>} : memref<4x1x8x8xf32, #tpu.memory_space<vmem>>, vector<4x1x8x8xf32>,
    %48 = arith.truncf %44 : vector<4x8x8xf32> to vector<4x8x8xbf16>
    "tpu.trace_start"() <{level = 10 : i32, message = "hqk,hkd->hqd"}> : () -> ()
    %cst_28 = arith.constant dense<0.000000e+00> : vector<4x8x8xf32>
    %49 = tpu.matmul %48, %23, %cst_28 {dimension_numbers = #tpu.dot_dimension_numbers<[2], [1], [1], [2], [0, 0, 0, 1, 1, 2], [0], [0]>} : vector<4x8x8xbf16>, vector<4x8x8xbf16>, vector<4x8x8xf32> -> vector<4x8x8xf32>
    "tpu.trace_stop"() : () -> ()
    %50 = arith.truncf %49 : vector<4x8x8xf32> to vector<4x8x8xbf16>
    %c0_29 = arith.constant 0 : index
    %c0_30 = arith.constant 0 : index
    %c0_31 = arith.constant 0 : index
    %51 = vector.load %arg9[%c0_29, %c0_30, %c0_31] : memref<4x8x32xbf16, #tpu.memory_space<vmem>>, vector<4x8x32xbf16>
    "tpu.trace_start"() <{level = 10 : i32, message = "hqd,hdm->hqm"}> : () -> ()
    %cst_32 = arith.constant dense<0.000000e+00> : vector<4x8x32xf32>
    %52 = tpu.matmul %50, %51, %cst_32 {dimension_numbers = #tpu.dot_dimension_numbers<[2], [1], [1], [2], [0, 0, 0, 1, 1, 2], [0], [0]>} : vector<4x8x8xbf16>, vector<4x8x32xbf16>, vector<4x8x32xf32> -> vector<4x8x32xf32>
    "tpu.trace_stop"() : () -> ()
    %cst_33 = arith.constant dense<0.000000e+00> : vector<8x32xf32>
    %53 = vector.multi_reduction <add>, %52, %cst_33 [0] : vector<4x8x32xf32> to vector<8x32xf32>
    %54 = arith.addf %53, %1 : vector<8x32xf32>
    %c0_34 = arith.constant 0 : index
    %c0_35 = arith.constant 0 : index
    %55 = vector.load %arg10[%c0_34, %c0_35] : memref<1x32xf32, #tpu.memory_space<vmem>>, vector<1x32xf32>
    %c0_36 = arith.constant 0 : index
    %c0_37 = arith.constant 0 : index
    %56 = vector.load %arg11[%c0_36, %c0_37] : memref<1x32xf32, #tpu.memory_space<vmem>>, vector<1x32xf32>
    %cst_38 = arith.constant dense<0.000000e+00> : vector<8xf32>
    %57 = vector.multi_reduction <add>, %54, %cst_38 [1] : vector<8x32xf32> to vector<8xf32>
    %58 = vector.shape_cast %57 : vector<8xf32> to vector<8x1xf32>
    %cst_39 = arith.constant 3.200000e+01 : f32
    %59 = vector.broadcast %cst_39 : f32 to vector<8x1xf32>
    %60 = arith.divf %58, %59 : vector<8x1xf32>
    %61 = vector.broadcast %60 : vector<8x1xf32> to vector<8x32xf32>
    %62 = arith.subf %54, %61 : vector<8x32xf32>
    %63 = arith.mulf %62, %62 : vector<8x32xf32>
    %cst_40 = arith.constant dense<0.000000e+00> : vector<8xf32>
    %64 = vector.multi_reduction <add>, %63, %cst_40 [1] : vector<8x32xf32> to vector<8xf32>
    %65 = vector.shape_cast %64 : vector<8xf32> to vector<8x1xf32>
    %cst_41 = arith.constant 0.0322580636 : f32
    %66 = vector.broadcast %cst_41 : f32 to vector<8x1xf32>
    %67 = arith.mulf %65, %66 : vector<8x1xf32>
    %68 = vector.broadcast %60 : vector<8x1xf32> to vector<8x32xf32>
    %69 = arith.subf %54, %68 : vector<8x32xf32>
    %70 = math.sqrt %67 : vector<8x1xf32>
    %cst_42 = arith.constant 1.000000e-03 : f32
    %71 = vector.broadcast %cst_42 : f32 to vector<8x1xf32>
    %72 = arith.addf %70, %71 : vector<8x1xf32>
    %73 = vector.broadcast %72 : vector<8x1xf32> to vector<8x32xf32>
    %74 = arith.divf %69, %73 : vector<8x32xf32>
    %75 = vector.broadcast %55 : vector<1x32xf32> to vector<8x32xf32>
    %76 = arith.mulf %74, %75 : vector<8x32xf32>
    %77 = vector.broadcast %56 : vector<1x32xf32> to vector<8x32xf32>
    %78 = arith.addf %76, %77 : vector<8x32xf32>
    %c0_43 = arith.constant 0 : index
    %c0_44 = arith.constant 0 : index
    %c0_45 = arith.constant 0 : index
    %79 = vector.load %arg12[%c0_43, %c0_44, %c0_45] : memref<1x8x32xf32, #tpu.memory_space<vmem>>, vector<1x8x32xf32>
    %80 = vector.shape_cast %79 : vector<1x8x32xf32> to vector<8x32xf32>
    %81 = vector.shape_cast %78 : vector<8x32xf32> to vector<1x8x32xf32>
    tpu.vector_store %arg12[%c0_43, %c0_44, %c0_45], %81 {strides = array<i32>} : memref<1x8x32xf32, #tpu.memory_space<vmem>>, vector<1x8x32xf32>,
    return
  }
  func.func @transform_0(%arg0: i32, %arg1: i32) -> (i32, i32, i32) {
    %c0_i32 = arith.constant 0 : i32
    %c0_i32_0 = arith.constant 0 : i32
    return %arg0, %arg1, %c0_i32 : i32, i32, i32
  }
  func.func @transform_1(%arg0: i32, %arg1: i32) -> (i32, i32, i32) {
    %c0_i32 = arith.constant 0 : i32
    %c0_i32_0 = arith.constant 0 : i32
    %c0_i32_1 = arith.constant 0 : i32
    return %arg0, %c0_i32, %c0_i32_0 : i32, i32, i32
  }
  func.func @transform_2(%arg0: i32, %arg1: i32) -> (i32, i32, i32) {
    %c0_i32 = arith.constant 0 : i32
    %c0_i32_0 = arith.constant 0 : i32
    %c0_i32_1 = arith.constant 0 : i32
    return %arg0, %c0_i32, %c0_i32_0 : i32, i32, i32
  }
  func.func @transform_3(%arg0: i32, %arg1: i32) -> (i32, i32, i32) {
    %c0_i32 = arith.constant 0 : i32
    %c0_i32_0 = arith.constant 0 : i32
    return %arg0, %arg1, %c0_i32 : i32, i32, i32
  }
  func.func @transform_4(%arg0: i32, %arg1: i32) -> (i32, i32) {
    %c0_i32 = arith.constant 0 : i32
    %c0_i32_0 = arith.constant 0 : i32
    %c0_i32_1 = arith.constant 0 : i32
    return %c0_i32, %c0_i32_0 : i32, i32
  }
  func.func @transform_5(%arg0: i32, %arg1: i32) -> (i32, i32) {
    %c0_i32 = arith.constant 0 : i32
    %c0_i32_0 = arith.constant 0 : i32
    %c0_i32_1 = arith.constant 0 : i32
    return %c0_i32, %c0_i32_0 : i32, i32
  }
  func.func @transform_6(%arg0: i32, %arg1: i32) -> (i32, i32) {
    %c0_i32 = arith.constant 0 : i32
    %c0_i32_0 = arith.constant 0 : i32
    %c0_i32_1 = arith.constant 0 : i32
    return %c0_i32, %c0_i32_0 : i32, i32
  }
  func.func @transform_7(%arg0: i32, %arg1: i32) -> (i32, i32, i32) {
    %c0_i32 = arith.constant 0 : i32
    %c0_i32_0 = arith.constant 0 : i32
    %c0_i32_1 = arith.constant 0 : i32
    %c0_i32_2 = arith.constant 0 : i32
    return %c0_i32, %c0_i32_0, %c0_i32_1 : i32, i32, i32
  }
  func.func @transform_8(%arg0: i32, %arg1: i32) -> (i32, i32) {
    %c0_i32 = arith.constant 0 : i32
    %c0_i32_0 = arith.constant 0 : i32
    %c0_i32_1 = arith.constant 0 : i32
    return %c0_i32, %c0_i32_0 : i32, i32
  }
  func.func @transform_9(%arg0: i32, %arg1: i32) -> (i32, i32) {
    %c0_i32 = arith.constant 0 : i32
    %c0_i32_0 = arith.constant 0 : i32
    %c0_i32_1 = arith.constant 0 : i32
    return %c0_i32, %c0_i32_0 : i32, i32
  }
  func.func @transform_10(%arg0: i32, %arg1: i32) -> (i32, i32, i32) {
    %c0_i32 = arith.constant 0 : i32
    %c0_i32_0 = arith.constant 0 : i32
    return %arg0, %arg1, %c0_i32 : i32, i32, i32
  }
  func.func @transform_11(%arg0: i32, %arg1: i32) -> (i32, i32, i32, i32) {
    %c0_i32 = arith.constant 0 : i32
    %c0_i32_0 = arith.constant 0 : i32
    %c0_i32_1 = arith.constant 0 : i32
    return %c0_i32, %arg0, %arg1, %c0_i32_0 : i32, i32, i32, i32
  }
}

</mosaic_0001>

<llo_original>
// kernel: tpu_custom_call.1
$region0: #{tpu_custom_call.1}
  #allocation0 [shape = 'u32[]', space=smem, size = 0x4, offset = 0x4, fixed_abs, tag = 'smem constant byte address 0x4 - core index']
  #allocation1 [shape = 'u32[144,128]{1,0:T(1,128)}', space=vmem, size = 0x12000, scoped, tag = 'internal scratch']
  %s0 = inlined_call_operand.hbm [shape: f32[2,8,32], index: 0, kind: input, shape index: {}]
  %s1 = inlined_call_operand.hbm [shape: f32[2,8,32], index: 1, kind: input, shape index: {}]
  %s2 = inlined_call_operand.hbm [shape: f32[2,8,32], index: 2, kind: input, shape index: {}]
  %s3 = inlined_call_operand.vmem [shape: s8[2,8,8], index: 3, kind: input, shape index: {}]
  %s4 = inlined_call_operand.hbm [shape: bf16[32,32], index: 4, kind: input, shape index: {}]
  %s5 = inlined_call_operand.hbm [shape: bf16[32,32], index: 5, kind: input, shape index: {}]
  %s6 = inlined_call_operand.hbm [shape: bf16[32,32], index: 6, kind: input, shape index: {}]
  %s7 = inlined_call_operand.hbm [shape: bf16[4,8,32], index: 7, kind: input, shape index: {}]
  %s8 = inlined_call_operand.vmem [shape: f32[1,32], index: 8, kind: input, shape index: {}]
  %s9 = inlined_call_operand.vmem [shape: f32[1,32], index: 9, kind: input, shape index: {}]
  %s10 = inlined_call_operand.hbm [shape: f32[2,8,32], index: 10, kind: output, shape index: {0}]
  %s11 = inlined_call_operand.hbm [shape: f32[4,2,8,8], index: 11, kind: output, shape index: {1}]
  %12 = xla_tuple %s10, %s11
  %s13 = sld [smem:[#allocation0]]
  $region109: #{tpu_custom_call.1} parent=0
    _
  %s15 = ssub.s32 1, %s13
  %s16 = scalar_select 0, %s15, %s13
  $region1: #{tpu_custom_call.1} parent=0
    #allocation2 [shape = 'u8[8192]{0}', space=vmem, size = 0x2000, scoped, tag = 'input window, operand 0']
    #allocation3 [shape = 's32[2]{0}', space=sflag, size = 0x8, scoped, tag = 'scoped memory for tpu_custom_call.1']
    #allocation4 [shape = 's32[2]{0}', space=sflag, size = 0x8, scoped, tag = 'scoped memory for tpu_custom_call.1']
    #allocation5 [shape = 'u8[8192]{0}', space=vmem, size = 0x2000, scoped, tag = 'input window, operand 1']
    #allocation6 [shape = 's32[2]{0}', space=sflag, size = 0x8, scoped, tag = 'scoped memory for tpu_custom_call.1']
    #allocation7 [shape = 'u8[8192]{0}', space=vmem, size = 0x2000, scoped, tag = 'input window, operand 2']
    #allocation8 [shape = 'u8[8192]{0}', space=vmem, size = 0x2000, scoped, tag = 'input window, operand 4, single buffered']
    #allocation9 [shape = 's32[1]{0}', space=sflag, size = 0x4, scoped, tag = 'scoped memory for tpu_custom_call.1']
    #allocation10 [shape = 'u8[8192]{0}', space=vmem, size = 0x2000, scoped, tag = 'input window, operand 5, single buffered']
    #allocation11 [shape = 'u8[8192]{0}', space=vmem, size = 0x2000, scoped, tag = 'input window, operand 6, single buffered']
    #allocation12 [shape = 's32[1]{0}', space=sflag, size = 0x4, scoped, tag = 'scoped memory for tpu_custom_call.1']
    #allocation13 [shape = 'u8[8192]{0}', space=vmem, size = 0x2000, scoped, tag = 'input window, operand 7, single buffered']
    #allocation14 [shape = 'u8[8192]{0}', space=vmem, size = 0x2000, scoped, tag = 'output window, operand 0']
    #allocation15 [shape = 'u8[32768]{0}', space=vmem, size = 0x8000, scoped, tag = 'output window, operand 1']
    #allocation16 [shape = 's32[2]{0}', space=sflag, size = 0x8, scoped, tag = 'scoped memory for tpu_custom_call.1']
    %17 = vsyncpa [#allocation3], 0
    %s18 = scalar_lea.sflag [#allocation3], 1
    %19 = vsyncpa %s18, 0
    %20 = vsyncpa [#allocation6], 0
    %s21 = scalar_lea.sflag [#allocation6], 1
    %22 = vsyncpa %s21, 0
    %23 = vsyncpa [#allocation9], 0
    %24 = vsyncpa [#allocation12], 0
    %25 = vsyncpa [#allocation4], 0
    %s26 = scalar_lea.sflag [#allocation4], 1
    %27 = vsyncpa %s26, 0
    %28 = vsyncpa [#allocation16], 0
    %s29 = scalar_lea.sflag [#allocation16], 1
    %30 = vsyncpa %s29, 0
    loop: start=0, step=1, limit=4
    $region2: #{tpu_custom_call.1} parent=1 // loop_pre_header
      _
    $region3: #{tpu_custom_call.1} parent=1 // loop_header
      %s32 = sphi 0, %s36
      %p33 = scmp.ge.s32.totalorder %s32, 4
      %s39 = sphi 0, %s51
      %s40 = sphi 0, %s47
      %s41 = sphi 0, %s39
      %s42 = sphi 0, %s40
      %s43 = sphi 0, %s41
      %s44 = sphi 0, %s42
      %s56 = sphi 0, %s58
      %s59 = sphi 0, %s56
      %s60 = sphi 0, %s59
      %s76 = sphi 0, %s60
      %s82 = sphi 0, %s84
      %s85 = sphi 0, %s82
      %s86 = sphi 0, %s85
      %s102 = sphi 0, %s86
      %s108 = sphi 0, %s110
      %s111 = sphi 0, %s108
      %s112 = sphi 0, %s111
      %s128 = sphi 0, %s112
      %s136 = sphi 0, %s138
      %s139 = sphi 0, %s136
      %s140 = sphi 0, %s139
      %s156 = sphi 0, %s140
      %s160 = sphi 0, %s160
      %s162 = sphi 0, %s160
      %s163 = sphi 0, %s162
      %s177 = sphi 0, %s163
      %s181 = sphi 0, %s181
      %s183 = sphi 0, %s181
      %s184 = sphi 0, %s183
      %s198 = sphi 0, %s184
      %s202 = sphi 0, %s202
      %s204 = sphi 0, %s202
      %s205 = sphi 0, %s204
      %s219 = sphi 0, %s205
      %s223 = sphi 0, %s223
      %s225 = sphi 0, %s223
      %s226 = sphi 0, %s225
      %s240 = sphi 0, %s226
      %s244 = sphi 0, %s244
      %s246 = sphi 0, %s244
      %s247 = sphi 0, %s246
      %s261 = sphi 0, %s247
      %s265 = sphi 0, %s265
      %s267 = sphi 0, %s265
      %s268 = sphi 0, %s267
      %s282 = sphi 0, %s268
      %s290 = sphi 0, %s292
      %s293 = sphi 0, %s290
      %s294 = sphi 0, %s293
      %s310 = sphi 0, %s294
      %s318 = sphi 0, %s320
      %s321 = sphi 0, %s318
      %s322 = sphi 0, %s321
      %s338 = sphi 0, %s322
    $region4: #{tpu_custom_call.1} parent=1 // loop_header_branch
      %35 = sbr.rel (%p33) target = $region8
    $region5: #{tpu_custom_call.1} parent=1 // loop_body
      %s37 = ssub.s32 %s32, 1
      %s38 = ssub.s32 %s32, 2
      %s45 = sadd.s32 1, %s40
      %p46 = scmp.ge.s32.totalorder %s45, 1
      %s47 = scalar_select %p46, 0, %s45
      %s48 = sadd.s32 1, %s39
      %s49 = scalar_select %p46, %s48, %s39
      %p50 = scmp.ge.s32.totalorder %s49, 2
      %s51 = scalar_select %p50, 0, %s49
      %s52 = ssub.s32 %s39, %s51
      %s53 = ssub.s32 %s40, %s47
      %s54 = sor.u32 %s52, %s53
      %p55 = scmp.eq.s32.totalorder %s54, 0
      %s57 = sadd.s32 %s56, 1
      %s58 = scalar_select %p55, %s56, %s57
      %p61 = pneg %p55
      %p62 = scmp.eq.s32.totalorder %s32, 1
      %p63 = por %p61, %p62
      %p64 = scmp.ne.s32.totalorder %s56, %s59
      %p65 = scmp.eq.s32.totalorder %s32, 0
      %p66 = por %p64, %p65
      %p67 = scmp.ne.s32.totalorder %s56, %s59
      %p68 = scmp.eq.s32.totalorder %s37, 1
      %p69 = por %p67, %p68
      %p70 = scmp.ne.s32.totalorder %s59, %s60
      %p71 = scmp.eq.s32.totalorder %s37, 0
      %p72 = por %p70, %p71
      %p73 = scmp.ne.s32.totalorder %s59, %s60
      %p74 = scmp.eq.s32.totalorder %s38, 1
      %p75 = por %p73, %p74
      %p77 = scmp.ne.s32.totalorder %s60, %s76
      %p78 = scmp.eq.s32.totalorder %s38, 0
      %p79 = por %p77, %p78
      %s80 = ssub.s32 %s39, %s51
      %p81 = scmp.eq.s32.totalorder %s80, 0
      %s83 = sadd.s32 %s82, 1
      %s84 = scalar_select %p81, %s82, %s83
      %p87 = pneg %p81
      %p88 = scmp.eq.s32.totalorder %s32, 1
      %p89 = por %p87, %p88
      %p90 = scmp.ne.s32.totalorder %s82, %s85
      %p91 = scmp.eq.s32.totalorder %s32, 0
      %p92 = por %p90, %p91
      %p93 = scmp.ne.s32.totalorder %s82, %s85
      %p94 = scmp.eq.s32.totalorder %s37, 1
      %p95 = por %p93, %p94
      %p96 = scmp.ne.s32.totalorder %s85, %s86
      %p97 = scmp.eq.s32.totalorder %s37, 0
      %p98 = por %p96, %p97
      %p99 = scmp.ne.s32.totalorder %s85, %s86
      %p100 = scmp.eq.s32.totalorder %s38, 1
      %p101 = por %p99, %p100
      %p103 = scmp.ne.s32.totalorder %s86, %s102
      %p104 = scmp.eq.s32.totalorder %s38, 0
      %p105 = por %p103, %p104
      %s106 = ssub.s32 %s39, %s51
      %p107 = scmp.eq.s32.totalorder %s106, 0
      %s109 = sadd.s32 %s108, 1
      %s110 = scalar_select %p107, %s108, %s109
      %p113 = pneg %p107
      %p114 = scmp.eq.s32.totalorder %s32, 1
      %p115 = por %p113, %p114
      %p116 = scmp.ne.s32.totalorder %s108, %s111
      %p117 = scmp.eq.s32.totalorder %s32, 0
      %p118 = por %p116, %p117
      %p119 = scmp.ne.s32.totalorder %s108, %s111
      %p120 = scmp.eq.s32.totalorder %s37, 1
      %p121 = por %p119, %p120
      %p122 = scmp.ne.s32.totalorder %s111, %s112
      %p123 = scmp.eq.s32.totalorder %s37, 0
      %p124 = por %p122, %p123
      %p125 = scmp.ne.s32.totalorder %s111, %s112
      %p126 = scmp.eq.s32.totalorder %s38, 1
      %p127 = por %p125, %p126
      %p129 = scmp.ne.s32.totalorder %s112, %s128
      %p130 = scmp.eq.s32.totalorder %s38, 0
      %p131 = por %p129, %p130
      %s132 = ssub.s32 %s39, %s51
      %s133 = ssub.s32 %s40, %s47
      %s134 = sor.u32 %s132, %s133
      %p135 = scmp.eq.s32.totalorder %s134, 0
      %s137 = sadd.s32 %s136, 1
      %s138 = scalar_select %p135, %s136, %s137
      %p141 = pneg %p135
      %p142 = scmp.eq.s32.totalorder %s32, 1
      %p143 = por %p141, %p142
      %p144 = scmp.ne.s32.totalorder %s136, %s139
      %p145 = scmp.eq.s32.totalorder %s32, 0
      %p146 = por %p144, %p145
      %p147 = scmp.ne.s32.totalorder %s136, %s139
      %p148 = scmp.eq.s32.totalorder %s37, 1
      %p149 = por %p147, %p148
      %p150 = scmp.ne.s32.totalorder %s139, %s140
      %p151 = scmp.eq.s32.totalorder %s37, 0
      %p152 = por %p150, %p151
      %p153 = scmp.ne.s32.totalorder %s139, %s140
      %p154 = scmp.eq.s32.totalorder %s38, 1
      %p155 = por %p153, %p154
      %p157 = scmp.ne.s32.totalorder %s140, %s156
      %p158 = scmp.eq.s32.totalorder %s38, 0
      %p159 = por %p157, %p158
      %s161 = sadd.s32 %s160, 1
      %p164 = scmp.eq.s32.totalorder %s32, 1
      %p165 = scmp.ne.s32.totalorder %s160, %s162
      %p166 = scmp.eq.s32.totalorder %s32, 0
      %p167 = por %p165, %p166
      %p168 = scmp.ne.s32.totalorder %s160, %s162
      %p169 = scmp.eq.s32.totalorder %s37, 1
      %p170 = por %p168, %p169
      %p171 = scmp.ne.s32.totalorder %s162, %s163
      %p172 = scmp.eq.s32.totalorder %s37, 0
      %p173 = por %p171, %p172
      %p174 = scmp.ne.s32.totalorder %s162, %s163
      %p175 = scmp.eq.s32.totalorder %s38, 1
      %p176 = por %p174, %p175
      %p178 = scmp.ne.s32.totalorder %s163, %s177
      %p179 = scmp.eq.s32.totalorder %s38, 0
      %p180 = por %p178, %p179
      %s182 = sadd.s32 %s181, 1
      %p185 = scmp.eq.s32.totalorder %s32, 1
      %p186 = scmp.ne.s32.totalorder %s181, %s183
      %p187 = scmp.eq.s32.totalorder %s32, 0
      %p188 = por %p186, %p187
      %p189 = scmp.ne.s32.totalorder %s181, %s183
      %p190 = scmp.eq.s32.totalorder %s37, 1
      %p191 = por %p189, %p190
      %p192 = scmp.ne.s32.totalorder %s183, %s184
      %p193 = scmp.eq.s32.totalorder %s37, 0
      %p194 = por %p192, %p193
      %p195 = scmp.ne.s32.totalorder %s183, %s184
      %p196 = scmp.eq.s32.totalorder %s38, 1
      %p197 = por %p195, %p196
      %p199 = scmp.ne.s32.totalorder %s184, %s198
      %p200 = scmp.eq.s32.totalorder %s38, 0
      %p201 = por %p199, %p200
      %s203 = sadd.s32 %s202, 1
      %p206 = scmp.eq.s32.totalorder %s32, 1
      %p207 = scmp.ne.s32.totalorder %s202, %s204
      %p208 = scmp.eq.s32.totalorder %s32, 0
      %p209 = por %p207, %p208
      %p210 = scmp.ne.s32.totalorder %s202, %s204
      %p211 = scmp.eq.s32.totalorder %s37, 1
      %p212 = por %p210, %p211
      %p213 = scmp.ne.s32.totalorder %s204, %s205
      %p214 = scmp.eq.s32.totalorder %s37, 0
      %p215 = por %p213, %p214
      %p216 = scmp.ne.s32.totalorder %s204, %s205
      %p217 = scmp.eq.s32.totalorder %s38, 1
      %p218 = por %p216, %p217
      %p220 = scmp.ne.s32.totalorder %s205, %s219
      %p221 = scmp.eq.s32.totalorder %s38, 0
      %p222 = por %p220, %p221
      %s224 = sadd.s32 %s223, 1
      %p227 = scmp.eq.s32.totalorder %s32, 1
      %p228 = scmp.ne.s32.totalorder %s223, %s225
      %p229 = scmp.eq.s32.totalorder %s32, 0
      %p230 = por %p228, %p229
      %p231 = scmp.ne.s32.totalorder %s223, %s225
      %p232 = scmp.eq.s32.totalorder %s37, 1
      %p233 = por %p231, %p232
      %p234 = scmp.ne.s32.totalorder %s225, %s226
      %p235 = scmp.eq.s32.totalorder %s37, 0
      %p236 = por %p234, %p235
      %p237 = scmp.ne.s32.totalorder %s225, %s226
      %p238 = scmp.eq.s32.totalorder %s38, 1
      %p239 = por %p237, %p238
      %p241 = scmp.ne.s32.totalorder %s226, %s240
      %p242 = scmp.eq.s32.totalorder %s38, 0
      %p243 = por %p241, %p242
      %s245 = sadd.s32 %s244, 1
      %p248 = scmp.eq.s32.totalorder %s32, 1
      %p249 = scmp.ne.s32.totalorder %s244, %s246
      %p250 = scmp.eq.s32.totalorder %s32, 0
      %p251 = por %p249, %p250
      %p252 = scmp.ne.s32.totalorder %s244, %s246
      %p253 = scmp.eq.s32.totalorder %s37, 1
      %p254 = por %p252, %p253
      %p255 = scmp.ne.s32.totalorder %s246, %s247
      %p256 = scmp.eq.s32.totalorder %s37, 0
      %p257 = por %p255, %p256
      %p258 = scmp.ne.s32.totalorder %s246, %s247
      %p259 = scmp.eq.s32.totalorder %s38, 1
      %p260 = por %p258, %p259
      %p262 = scmp.ne.s32.totalorder %s247, %s261
      %p263 = scmp.eq.s32.totalorder %s38, 0
      %p264 = por %p262, %p263
      %s266 = sadd.s32 %s265, 1
      %p269 = scmp.eq.s32.totalorder %s32, 1
      %p270 = scmp.ne.s32.totalorder %s265, %s267
      %p271 = scmp.eq.s32.totalorder %s32, 0
      %p272 = por %p270, %p271
      %p273 = scmp.ne.s32.totalorder %s265, %s267
      %p274 = scmp.eq.s32.totalorder %s37, 1
      %p275 = por %p273, %p274
      %p276 = scmp.ne.s32.totalorder %s267, %s268
      %p277 = scmp.eq.s32.totalorder %s37, 0
      %p278 = por %p276, %p277
      %p279 = scmp.ne.s32.totalorder %s267, %s268
      %p280 = scmp.eq.s32.totalorder %s38, 1
      %p281 = por %p279, %p280
      %p283 = scmp.ne.s32.totalorder %s268, %s282
      %p284 = scmp.eq.s32.totalorder %s38, 0
      %p285 = por %p283, %p284
      %s286 = ssub.s32 %s39, %s51
      %s287 = ssub.s32 %s40, %s47
      %s288 = sor.u32 %s286, %s287
      %p289 = scmp.eq.s32.totalorder %s288, 0
      %s291 = sadd.s32 %s290, 1
      %s292 = scalar_select %p289, %s290, %s291
      %p295 = pneg %p289
      %p296 = scmp.eq.s32.totalorder %s32, 1
      %p297 = por %p295, %p296
      %p298 = scmp.ne.s32.totalorder %s290, %s293
      %p299 = scmp.eq.s32.totalorder %s32, 0
      %p300 = por %p298, %p299
      %p301 = scmp.ne.s32.totalorder %s290, %s293
      %p302 = scmp.eq.s32.totalorder %s37, 1
      %p303 = por %p301, %p302
      %p304 = scmp.ne.s32.totalorder %s293, %s294
      %p305 = scmp.eq.s32.totalorder %s37, 0
      %p306 = por %p304, %p305
      %p307 = scmp.ne.s32.totalorder %s293, %s294
      %p308 = scmp.eq.s32.totalorder %s38, 1
      %p309 = por %p307, %p308
      %p311 = scmp.ne.s32.totalorder %s294, %s310
      %p312 = scmp.eq.s32.totalorder %s38, 0
      %p313 = por %p311, %p312
      %s314 = ssub.s32 %s39, %s51
      %s315 = ssub.s32 %s40, %s47
      %s316 = sor.u32 %s314, %s315
      %p317 = scmp.eq.s32.totalorder %s316, 0
      %s319 = sadd.s32 %s318, 1
      %s320 = scalar_select %p317, %s318, %s319
      %p323 = pneg %p317
      %p324 = scmp.eq.s32.totalorder %s32, 1
      %p325 = por %p323, %p324
      %p326 = scmp.ne.s32.totalorder %s318, %s321
      %p327 = scmp.eq.s32.totalorder %s32, 0
      %p328 = por %p326, %p327
      %p329 = scmp.ne.s32.totalorder %s318, %s321
      %p330 = scmp.eq.s32.totalorder %s37, 1
      %p331 = por %p329, %p330
      %p332 = scmp.ne.s32.totalorder %s321, %s322
      %p333 = scmp.eq.s32.totalorder %s37, 0
      %p334 = por %p332, %p333
      %p335 = scmp.ne.s32.totalorder %s321, %s322
      %p336 = scmp.eq.s32.totalorder %s38, 1
      %p337 = por %p335, %p336
      %p339 = scmp.ne.s32.totalorder %s322, %s338
      %p340 = scmp.eq.s32.totalorder %s38, 0
      %p341 = por %p339, %p340
      %p342 = scmp.le.s32.totalorder 1, %s32
      %p343 = scmp.lt.s32.totalorder %s32, 3
      %p344 = pnand %p342, %p343
      %p345 = pneg %p344
      // Predicated region
      $region9: #{tpu_custom_call.1} parent=5 // pred_check
        _
      $region10: #{tpu_custom_call.1} parent=5 // pred_check_branch
        %347 = sbr.rel (%p344) target = $region12
      $region11: #{tpu_custom_call.1} parent=5 // pred_region
        %s348 = ssub.s32 %s32, 1
        // Predicated region
        $region13: #{tpu_custom_call.1} parent=11 // pred_check
          %p349 = pneg %p173
        $region14: #{tpu_custom_call.1} parent=11 // pred_check_branch
          %351 = sbr.rel (%p349) target = $region16
        $region15: #{tpu_custom_call.1} parent=11 // pred_region
          %s353 = ssub.s32 256, 256
          %354 = vsyncadd [#allocation9], %s353
          %s355 = sshll.u32 [#allocation8], 4
          %s356 = int_to_ptr.vmem [resolvable:$true] %s355
          %361 = dma.hbm_to_vmem [thread:$0]  %s4, 256, %s356, [#allocation9], 64, 64, 4
        $region16: #{tpu_custom_call.1} parent=11 // pred_fallthru
          _
        // Predicated region
        $region17: #{tpu_custom_call.1} parent=11 // pred_check
          %p362 = pneg %p194
        $region18: #{tpu_custom_call.1} parent=11 // pred_check_branch
          %364 = sbr.rel (%p362) target = $region20
        $region19: #{tpu_custom_call.1} parent=11 // pred_region
          %s366 = ssub.s32 256, 256
          %367 = vsyncadd [#allocation9], %s366
          %s368 = sshll.u32 [#allocation10], 4
          %s369 = int_to_ptr.vmem [resolvable:$true] %s368
          %374 = dma.hbm_to_vmem [thread:$0]  %s5, 256, %s369, [#allocation9], 64, 64, 4
        $region20: #{tpu_custom_call.1} parent=11 // pred_fallthru
          _
        // Predicated region
        $region21: #{tpu_custom_call.1} parent=11 // pred_check
          %p375 = pneg %p215
        $region22: #{tpu_custom_call.1} parent=11 // pred_check_branch
          %377 = sbr.rel (%p375) target = $region24
        $region23: #{tpu_custom_call.1} parent=11 // pred_region
          %s379 = ssub.s32 256, 256
          %380 = vsyncadd [#allocation12], %s379
          %s381 = sshll.u32 [#allocation11], 4
          %s382 = int_to_ptr.vmem [resolvable:$true] %s381
          %387 = dma.hbm_to_vmem [thread:$0]  %s6, 256, %s382, [#allocation12], 64, 64, 4
        $region24: #{tpu_custom_call.1} parent=11 // pred_fallthru
          _
        // Predicated region
        $region25: #{tpu_custom_call.1} parent=11 // pred_check
          %p388 = pneg %p236
        $region26: #{tpu_custom_call.1} parent=11 // pred_check_branch
          %390 = sbr.rel (%p388) target = $region28
        $region27: #{tpu_custom_call.1} parent=11 // pred_region
          %s392 = ssub.s32 256, 256
          %393 = vsyncadd [#allocation12], %s392
          %s394 = sshll.u32 [#allocation13], 4
          %s395 = int_to_ptr.vmem [resolvable:$true] %s394
          %400 = dma.hbm_to_vmem [thread:$0]  %s7, 256, %s395, [#allocation12], 64, 64, 4
        $region28: #{tpu_custom_call.1} parent=11 // pred_fallthru
          _
        // Predicated region
        $region29: #{tpu_custom_call.1} parent=11 // pred_check
          %p401 = pneg %p257
        $region30: #{tpu_custom_call.1} parent=11 // pred_check_branch
          %403 = sbr.rel (%p401) target = $region32
        $region31: #{tpu_custom_call.1} parent=11 // pred_region
          _
        $region32: #{tpu_custom_call.1} parent=11 // pred_fallthru
          _
        // Predicated region
        $region33: #{tpu_custom_call.1} parent=11 // pred_check
          %p404 = pneg %p278
        $region34: #{tpu_custom_call.1} parent=11 // pred_check_branch
          %406 = sbr.rel (%p404) target = $region36
        $region35: #{tpu_custom_call.1} parent=11 // pred_region
          _
        $region36: #{tpu_custom_call.1} parent=11 // pred_fallthru
          _
      $region12: #{tpu_custom_call.1} parent=5 // pred_fallthru
        _
      %p407 = scmp.lt.s32.totalorder %s32, 2
      // Predicated region
      $region37: #{tpu_custom_call.1} parent=5 // pred_check
        %p408 = pneg %p407
      $region38: #{tpu_custom_call.1} parent=5 // pred_check_branch
        %410 = sbr.rel (%p408) target = $region40
      $region39: #{tpu_custom_call.1} parent=5 // pred_region
        // Predicated region
        $region41: #{tpu_custom_call.1} parent=39 // pred_check
          %p411 = pneg %p66
        $region42: #{tpu_custom_call.1} parent=39 // pred_check_branch
          %413 = sbr.rel (%p411) target = $region44
        $region43: #{tpu_custom_call.1} parent=39 // pred_region
          %s414 = sand.u32 %s56, 1
          %s415 = scalar_lea.sflag [#allocation3], %s414
          %s416 = sand.u32 %s56, 1
          %s417 = smul.addr %s416, 8
          %s418 = scalar_lea.vmem [#allocation2], %s417
          %s420 = ssub.s32 128, 128
          %421 = vsyncadd %s415, %s420
          %s422 = sadd.s32 %s40, %s39
          %s423 = smul.addr %s422, 128
          %s424 = scalar_lea.hbm %s0, %s423
          %s426 = sshll.u32 %s418, 4
          %s427 = int_to_ptr.vmem [resolvable:$true] %s426
          %429 = dma.hbm_to_vmem [thread:$0]  %s424, 128, %s427, %s415
        $region44: #{tpu_custom_call.1} parent=39 // pred_fallthru
          _
        // Predicated region
        $region45: #{tpu_custom_call.1} parent=39 // pred_check
          %p430 = pneg %p92
        $region46: #{tpu_custom_call.1} parent=39 // pred_check_branch
          %432 = sbr.rel (%p430) target = $region48
        $region47: #{tpu_custom_call.1} parent=39 // pred_region
          %s433 = sand.u32 %s32, 1
          %s434 = scalar_lea.sflag [#allocation6], %s433
          %s435 = sand.u32 %s82, 1
          %s436 = smul.addr %s435, 8
          %s437 = scalar_lea.vmem [#allocation5], %s436
          %s439 = ssub.s32 128, 128
          %440 = vsyncadd %s434, %s439
          %s441 = smul.addr %s39, 128
          %s442 = scalar_lea.hbm %s1, %s441
          %s444 = sshll.u32 %s437, 4
          %s445 = int_to_ptr.vmem [resolvable:$true] %s444
          %447 = dma.hbm_to_vmem [thread:$0]  %s442, 128, %s445, %s434
        $region48: #{tpu_custom_call.1} parent=39 // pred_fallthru
          _
        // Predicated region
        $region49: #{tpu_custom_call.1} parent=39 // pred_check
          %p448 = pneg %p118
        $region50: #{tpu_custom_call.1} parent=39 // pred_check_branch
          %450 = sbr.rel (%p448) target = $region52
        $region51: #{tpu_custom_call.1} parent=39 // pred_region
          %s451 = sand.u32 %s32, 1
          %s452 = scalar_lea.sflag [#allocation6], %s451
          %s453 = sand.u32 %s108, 1
          %s454 = smul.addr %s453, 8
          %s455 = scalar_lea.vmem [#allocation7], %s454
          %s457 = ssub.s32 128, 128
          %458 = vsyncadd %s452, %s457
          %s459 = smul.addr %s39, 128
          %s460 = scalar_lea.hbm %s2, %s459
          %s462 = sshll.u32 %s455, 4
          %s463 = int_to_ptr.vmem [resolvable:$true] %s462
          %465 = dma.hbm_to_vmem [thread:$0]  %s460, 128, %s463, %s452
        $region52: #{tpu_custom_call.1} parent=39 // pred_fallthru
          _
        // Predicated region
        $region53: #{tpu_custom_call.1} parent=39 // pred_check
          %p466 = pneg %p146
        $region54: #{tpu_custom_call.1} parent=39 // pred_check_branch
          %468 = sbr.rel (%p466) target = $region56
        $region55: #{tpu_custom_call.1} parent=39 // pred_region
          %p469 = scmp.lt.s32.totalorder %s39, 1
          %s470 = scalar_select %p469, %s39, 1
          %p471 = scmp.lt.s32.totalorder %s40, 0
          %s472 = scalar_select %p471, %s40, 0
          %s473 = sadd.s32 %s472, %s470
          %s474 = smul.addr %s473, 2
          %s475 = scalar_lea.vmem %s3, %s474
        $region56: #{tpu_custom_call.1} parent=39 // pred_fallthru
          _
      $region40: #{tpu_custom_call.1} parent=5 // pred_fallthru
        _
      %p476 = scmp.le.s32.totalorder 1, %s32
      %p477 = scmp.lt.s32.totalorder %s32, 3
      %p478 = pnand %p476, %p477
      %p479 = pneg %p478
      // Predicated region
      $region57: #{tpu_custom_call.1} parent=5 // pred_check
        _
      $region58: #{tpu_custom_call.1} parent=5 // pred_check_branch
        %481 = sbr.rel (%p478) target = $region60
      $region59: #{tpu_custom_call.1} parent=5 // pred_region
        %s482 = ssub.s32 %s32, 1
        %s483 = sand.u32 %s59, 1
        %s484 = scalar_lea.sflag [#allocation3], %s483
        %s485 = sand.u32 %s59, 1
        %s486 = smul.addr %s485, 8
        %s487 = scalar_lea.vmem [#allocation2], %s486
        // Predicated region
        $region61: #{tpu_custom_call.1} parent=59 // pred_check
          %p488 = pneg %p72
        $region62: #{tpu_custom_call.1} parent=59 // pred_check_branch
          %490 = sbr.rel (%p488) target = $region64
        $region63: #{tpu_custom_call.1} parent=59 // pred_region
          %491 = dma.done %s484, 128
        $region64: #{tpu_custom_call.1} parent=59 // pred_fallthru
          _
        %s492 = sand.u32 %s37, 1
        %s493 = scalar_lea.sflag [#allocation6], %s492
        %s494 = sand.u32 %s85, 1
        %s495 = smul.addr %s494, 8
        %s496 = scalar_lea.vmem [#allocation5], %s495
        // Predicated region
        $region65: #{tpu_custom_call.1} parent=59 // pred_check
          %p497 = pneg %p98
        $region66: #{tpu_custom_call.1} parent=59 // pred_check_branch
          %499 = sbr.rel (%p497) target = $region68
        $region67: #{tpu_custom_call.1} parent=59 // pred_region
          %500 = dma.done %s493, 128
        $region68: #{tpu_custom_call.1} parent=59 // pred_fallthru
          _
        %s501 = sand.u32 %s37, 1
        %s502 = scalar_lea.sflag [#allocation6], %s501
        %s503 = sand.u32 %s111, 1
        %s504 = smul.addr %s503, 8
        %s505 = scalar_lea.vmem [#allocation7], %s504
        // Predicated region
        $region69: #{tpu_custom_call.1} parent=59 // pred_check
          %p506 = pneg %p124
        $region70: #{tpu_custom_call.1} parent=59 // pred_check_branch
          %508 = sbr.rel (%p506) target = $region72
        $region71: #{tpu_custom_call.1} parent=59 // pred_region
          %509 = dma.done %s502, 128
        $region72: #{tpu_custom_call.1} parent=59 // pred_fallthru
          _
        // Predicated region
        $region73: #{tpu_custom_call.1} parent=59 // pred_check
          %p510 = pneg %p173
        $region74: #{tpu_custom_call.1} parent=59 // pred_check_branch
          %512 = sbr.rel (%p510) target = $region76
        $region75: #{tpu_custom_call.1} parent=59 // pred_region
          %513 = dma.done [#allocation9], 256
        $region76: #{tpu_custom_call.1} parent=59 // pred_fallthru
          _
        // Predicated region
        $region77: #{tpu_custom_call.1} parent=59 // pred_check
          %p514 = pneg %p194
        $region78: #{tpu_custom_call.1} parent=59 // pred_check_branch
          %516 = sbr.rel (%p514) target = $region80
        $region79: #{tpu_custom_call.1} parent=59 // pred_region
          %517 = dma.done [#allocation9], 256
        $region80: #{tpu_custom_call.1} parent=59 // pred_fallthru
          _
        // Predicated region
        $region81: #{tpu_custom_call.1} parent=59 // pred_check
          %p518 = pneg %p215
        $region82: #{tpu_custom_call.1} parent=59 // pred_check_branch
          %520 = sbr.rel (%p518) target = $region84
        $region83: #{tpu_custom_call.1} parent=59 // pred_region
          %521 = dma.done [#allocation12], 256
        $region84: #{tpu_custom_call.1} parent=59 // pred_fallthru
          _
        // Predicated region
        $region85: #{tpu_custom_call.1} parent=59 // pred_check
          %p522 = pneg %p236
        $region86: #{tpu_custom_call.1} parent=59 // pred_check_branch
          %524 = sbr.rel (%p522) target = $region88
        $region87: #{tpu_custom_call.1} parent=59 // pred_region
          %525 = dma.done [#allocation12], 256
        $region88: #{tpu_custom_call.1} parent=59 // pred_fallthru
          _
        %s526 = sand.u32 %s59, 1
        %s527 = scalar_lea.sflag [#allocation3], %s526
        %s528 = sand.u32 %s59, 1
        %s529 = smul.addr %s528, 8
        %s530 = scalar_lea.vmem [#allocation2], %s529
        %p531 = pneg %p72
        %p532 = pneg %p69
        %s533 = sand.u32 %s37, 1
        %s534 = scalar_lea.sflag [#allocation6], %s533
        %s535 = sand.u32 %s85, 1
        %s536 = smul.addr %s535, 8
        %s537 = scalar_lea.vmem [#allocation5], %s536
        %p538 = pneg %p98
        %p539 = pneg %p95
        %s540 = sand.u32 %s37, 1
        %s541 = scalar_lea.sflag [#allocation6], %s540
        %s542 = sand.u32 %s111, 1
        %s543 = smul.addr %s542, 8
        %s544 = scalar_lea.vmem [#allocation7], %s543
        %p545 = pneg %p124
        %p546 = pneg %p121
        %p547 = scmp.lt.s32.totalorder %s41, 1
        %s548 = scalar_select %p547, %s41, 1
        %p549 = scmp.lt.s32.totalorder %s42, 0
        %s550 = scalar_select %p549, %s42, 0
        %s551 = sadd.s32 %s550, %s548
        %s552 = smul.addr %s551, 2
        %s553 = scalar_lea.vmem %s3, %s552
        %p554 = pneg %p152
        %p555 = pneg %p149
        %p556 = pneg %p173
        %p557 = pneg %p170
        %p558 = pneg %p194
        %p559 = pneg %p191
        %p560 = pneg %p215
        %p561 = pneg %p212
        %p562 = pneg %p236
        %p563 = pneg %p233
        %p564 = pneg %p257
        %p565 = pneg %p254
        %p566 = pneg %p278
        %p567 = pneg %p275
        %p568 = pneg %p306
        %p569 = pneg %p303
        %s570 = sand.u32 %s293, 1
        %s571 = scalar_lea.sflag [#allocation4], %s570
        %s572 = sand.u32 %s293, 1
        %s573 = smul.addr %s572, 8
        %s574 = scalar_lea.vmem [#allocation14], %s573
        %p575 = pneg %p334
        %p576 = pneg %p331
        %s577 = sand.u32 %s321, 1
        %s578 = scalar_lea.sflag [#allocation16], %s577
        %s579 = sand.u32 %s321, 1
        %s580 = smul.addr %s579, 32
        %s581 = scalar_lea.vmem [#allocation15], %s580
        %p582 = scmp.lt.s32.totalorder %s41, 1
        %s583 = scalar_select %p582, %s41, 1
        %p584 = scmp.lt.s32.totalorder %s42, 0
        %s585 = scalar_select %p584, %s42, 0
        %s586 = sadd.s32 %s585, %s583
        %s587 = smul.addr %s586, 2
        %s588 = scalar_lea.vmem %s3, %s587
        %v590 = vld [vmem:[%s487] sm:$0xff]
        %v591 = vld [vmem:[%s496] sm:$0xff]
        %v592 = vld [vmem:[%s505] sm:$0xff]
        %v593 = vpack.c.bf16 %v590, %v590
        %v594 = vld [vmem:[#allocation8] sm:$0xf]
        %v595 = vld [vmem:[#allocation8 + $0x4] sm:$0xf]
        %v596 = vld [vmem:[#allocation8 + $0x8] sm:$0xf]
        %v597 = vld [vmem:[#allocation8 + $0xc] sm:$0xf]
        %v602 = vunpack.c.l.b16 %v594
        %v603 = vunpack.c.l.b16 %v595
        %v604 = vunpack.c.l.b16 %v596
        %v605 = vunpack.c.l.b16 %v597
        %v606 = vpack.c.b16 %v603, %v602
        %v607 = vpack.c.b16 %v605, %v604
        %vm610 = vcmask 261120
        %v612 = vsel %vm610, %v593, 0
        %614 = vmatprep.subr.bf16.mxu0 0
        %615 = vmatpush1.bf16.msra.mxu0 0
        %616 = vmatprep.subr.bf16.mxu0 0
        %617 = vmatpush1.bf16.msra.mxu0 0
        %618 = vmatprep.subr.bf16.mxu0 0
        %619 = vmatpush1.bf16.msra.mxu0 0
        %620 = vmatprep.subr.bf16.mxu0 0
        %621 = vmatpush1.bf16.msra.mxu0 0
        %622 = vmatprep.subr.bf16.mxu0 0
        %623 = vmatpush1.bf16.msra.mxu0 0
        %624 = vmatprep.subr.bf16.mxu0 0
        %625 = vmatpush1.bf16.msra.mxu0 0
        %626 = vmatprep.subr.bf16.mxu0 0
        %627 = vmatpush1.bf16.msra.mxu0 %v607
        %628 = vmatprep.subr.bf16.mxu0 0
        %629 = vmatpush1.bf16.msra.mxu0 %v606
        %630 = vmatprep.subr.bf16.mxu0 0
        %631 = vmatpush2.bf16.msra.mxu0 0
        %632 = vmatprep.subr.bf16.mxu0 0
        %633 = vmatpush2.bf16.msra.mxu0 0
        %634 = vmatprep.subr.bf16.mxu0 0
        %635 = vmatpush2.bf16.msra.mxu0 0
        %636 = vmatprep.subr.bf16.mxu0 0
        %637 = vmatpush2.bf16.msra.mxu0 0
        %638 = vmatprep.subr.bf16.mxu0 0
        %639 = vmatpush2.bf16.msra.mxu0 0
        %640 = vmatprep.subr.bf16.mxu0 0
        %641 = vmatpush2.bf16.msra.mxu0 0
        %642 = vmatprep.subr.bf16.mxu0 0
        %643 = vmatpush2.bf16.msra.mxu0 0
        %644 = vmatprep.subr.bf16.mxu0 0
        %645 = vmatpush2.bf16.msra.mxu0 0
        %646 = vmatprep.mubr.bf16.mxu0 0
        %647 = vmatmul.mubr.bf16.gmra.mxu0 %v612
        %v648 = vpop.f32.mrf.mxu0
        %v649 = vadd.f32 0.0, %v648
        %v650 = vpop.f32.mrf.mxu0
        %v651 = vpop.f32.mrf.mxu0
        %v652 = vpop.f32.mrf.mxu0
        %653 = vdwg.mxu0
        %v654 = vpack.c.bf16 %v591, %v591
        %v655 = vld [vmem:[#allocation10] sm:$0xf]
        %v656 = vld [vmem:[#allocation10 + $0x4] sm:$0xf]
        %v657 = vld [vmem:[#allocation10 + $0x8] sm:$0xf]
        %v658 = vld [vmem:[#allocation10 + $0xc] sm:$0xf]
        %v663 = vunpack.c.l.b16 %v655
        %v664 = vunpack.c.l.b16 %v656
        %v665 = vunpack.c.l.b16 %v657
        %v666 = vunpack.c.l.b16 %v658
        %v667 = vpack.c.b16 %v664, %v663
        %v668 = vpack.c.b16 %v666, %v665
        %v672 = vsel %vm610, %v654, 0
        %674 = vmatprep.subr.bf16.mxu0 0
        %675 = vmatpush1.bf16.msra.mxu0 0
        %676 = vmatprep.subr.bf16.mxu0 0
        %677 = vmatpush1.bf16.msra.mxu0 0
        %678 = vmatprep.subr.bf16.mxu0 0
        %679 = vmatpush1.bf16.msra.mxu0 0
        %680 = vmatprep.subr.bf16.mxu0 0
        %681 = vmatpush1.bf16.msra.mxu0 0
        %682 = vmatprep.subr.bf16.mxu0 0
        %683 = vmatpush1.bf16.msra.mxu0 0
        %684 = vmatprep.subr.bf16.mxu0 0
        %685 = vmatpush1.bf16.msra.mxu0 0
        %686 = vmatprep.subr.bf16.mxu0 0
        %687 = vmatpush1.bf16.msra.mxu0 %v668
        %688 = vmatprep.subr.bf16.mxu0 0
        %689 = vmatpush1.bf16.msra.mxu0 %v667
        %690 = vmatprep.subr.bf16.mxu0 0
        %691 = vmatpush2.bf16.msra.mxu0 0
        %692 = vmatprep.subr.bf16.mxu0 0
        %693 = vmatpush2.bf16.msra.mxu0 0
        %694 = vmatprep.subr.bf16.mxu0 0
        %695 = vmatpush2.bf16.msra.mxu0 0
        %696 = vmatprep.subr.bf16.mxu0 0
        %697 = vmatpush2.bf16.msra.mxu0 0
        %698 = vmatprep.subr.bf16.mxu0 0
        %699 = vmatpush2.bf16.msra.mxu0 0
        %700 = vmatprep.subr.bf16.mxu0 0
        %701 = vmatpush2.bf16.msra.mxu0 0
        %702 = vmatprep.subr.bf16.mxu0 0
        %703 = vmatpush2.bf16.msra.mxu0 0
        %704 = vmatprep.subr.bf16.mxu0 0
        %705 = vmatpush2.bf16.msra.mxu0 0
        %706 = vmatprep.mubr.bf16.mxu0 0
        %707 = vmatmul.mubr.bf16.gmra.mxu0 %v672
        %v708 = vpop.f32.mrf.mxu0
        %v709 = vadd.f32 0.0, %v708
        %v710 = vpop.f32.mrf.mxu0
        %v711 = vpop.f32.mrf.mxu0
        %v712 = vpop.f32.mrf.mxu0
        %713 = vdwg.mxu0
        %v714 = vpack.c.bf16 %v592, %v592
        %v715 = vld [vmem:[#allocation11] sm:$0xf]
        %v716 = vld [vmem:[#allocation11 + $0x4] sm:$0xf]
        %v717 = vld [vmem:[#allocation11 + $0x8] sm:$0xf]
        %v718 = vld [vmem:[#allocation11 + $0xc] sm:$0xf]
        %v723 = vunpack.c.l.b16 %v715
        %v724 = vunpack.c.l.b16 %v716
        %v725 = vunpack.c.l.b16 %v717
        %v726 = vunpack.c.l.b16 %v718
        %v727 = vpack.c.b16 %v724, %v723
        %v728 = vpack.c.b16 %v726, %v725
        %v732 = vsel %vm610, %v714, 0
        %734 = vmatprep.subr.bf16.mxu0 0
        %735 = vmatpush1.bf16.msra.mxu0 0
        %736 = vmatprep.subr.bf16.mxu0 0
        %737 = vmatpush1.bf16.msra.mxu0 0
        %738 = vmatprep.subr.bf16.mxu0 0
        %739 = vmatpush1.bf16.msra.mxu0 0
        %740 = vmatprep.subr.bf16.mxu0 0
        %741 = vmatpush1.bf16.msra.mxu0 0
        %742 = vmatprep.subr.bf16.mxu0 0
        %743 = vmatpush1.bf16.msra.mxu0 0
        %744 = vmatprep.subr.bf16.mxu0 0
        %745 = vmatpush1.bf16.msra.mxu0 0
        %746 = vmatprep.subr.bf16.mxu0 0
        %747 = vmatpush1.bf16.msra.mxu0 %v728
        %748 = vmatprep.subr.bf16.mxu0 0
        %749 = vmatpush1.bf16.msra.mxu0 %v727
        %750 = vmatprep.subr.bf16.mxu0 0
        %751 = vmatpush2.bf16.msra.mxu0 0
        %752 = vmatprep.subr.bf16.mxu0 0
        %753 = vmatpush2.bf16.msra.mxu0 0
        %754 = vmatprep.subr.bf16.mxu0 0
        %755 = vmatpush2.bf16.msra.mxu0 0
        %756 = vmatprep.subr.bf16.mxu0 0
        %757 = vmatpush2.bf16.msra.mxu0 0
        %758 = vmatprep.subr.bf16.mxu0 0
        %759 = vmatpush2.bf16.msra.mxu0 0
        %760 = vmatprep.subr.bf16.mxu0 0
        %761 = vmatpush2.bf16.msra.mxu0 0
        %762 = vmatprep.subr.bf16.mxu0 0
        %763 = vmatpush2.bf16.msra.mxu0 0
        %764 = vmatprep.subr.bf16.mxu0 0
        %765 = vmatpush2.bf16.msra.mxu0 0
        %766 = vmatprep.mubr.bf16.mxu0 0
        %767 = vmatmul.mubr.bf16.gmra.mxu0 %v732
        %v768 = vpop.f32.mrf.mxu0
        %v769 = vadd.f32 0.0, %v768
        %v770 = vpop.f32.mrf.mxu0
        %v771 = vpop.f32.mrf.mxu0
        %v772 = vpop.f32.mrf.mxu0
        %773 = vdwg.mxu0
        %775 = vrot.lane.b32.xlu0 %v649, 120
        %v776 = vpop.permute.xlu0 %775
        %778 = vrot.lane.b32.xlu0 %v649, 112
        %v779 = vpop.permute.xlu0 %778
        %781 = vrot.lane.b32.xlu0 %v649, 104
        %v782 = vpop.permute.xlu0 %781
        %v784 = vcombine.low %v649, %v779
        %v785 = vcombine.high %v649, %v779
        %v787 = vunpack.c.l.s4 1983009808
        %v788 = vunpack.c.0.s8 %v787
        %v789 = vlaneseq
        %v790 = vshrl.u32 %v789, 7
        %v791 = vsub.s32 %v788, %v790
        %v792 = vrot.slane %v784, %v791
        %v794 = vunpack.c.l.s4 1983009808
        %v795 = vunpack.c.0.s8 %v794
        %v796 = vlaneseq
        %v797 = vshrl.u32 %v796, 7
        %v798 = vsub.s32 %v795, %v797
        %v799 = vrot.slane %v785, %v798
        %v800 = vcombine.low %v776, %v782
        %v801 = vcombine.high %v776, %v782
        %v803 = vunpack.c.l.s4 1983009808
        %v804 = vunpack.c.0.s8 %v803
        %v805 = vlaneseq
        %v806 = vshrl.u32 %v805, 7
        %v807 = vsub.s32 %v804, %v806
        %v808 = vrot.slane %v800, %v807
        %v810 = vunpack.c.l.s4 1983009808
        %v811 = vunpack.c.0.s8 %v810
        %v812 = vlaneseq
        %v813 = vshrl.u32 %v812, 7
        %v814 = vsub.s32 %v811, %v813
        %v815 = vrot.slane %v801, %v814
        %v816 = vcombine.low %v792, %v808
        %v817 = vcombine.high %v792, %v808
        %v819 = vunpack.c.l.s4 1934713408
        %v820 = vunpack.c.0.s8 %v819
        %v821 = vlaneseq
        %v822 = vshrl.u32 %v821, 7
        %v823 = vsub.s32 %v820, %v822
        %v824 = vrot.slane %v816, %v823
        %v826 = vunpack.c.l.s4 1934713408
        %v827 = vunpack.c.0.s8 %v826
        %v828 = vlaneseq
        %v829 = vshrl.u32 %v828, 7
        %v830 = vsub.s32 %v827, %v829
        %v831 = vrot.slane %v817, %v830
        %v832 = vcombine.low %v799, %v815
        %v833 = vcombine.high %v799, %v815
        %v835 = vunpack.c.l.s4 1934713408
        %v836 = vunpack.c.0.s8 %v835
        %v837 = vlaneseq
        %v838 = vshrl.u32 %v837, 7
        %v839 = vsub.s32 %v836, %v838
        %v840 = vrot.slane %v832, %v839
        %v842 = vunpack.c.l.s4 1934713408
        %v843 = vunpack.c.0.s8 %v842
        %v844 = vlaneseq
        %v845 = vshrl.u32 %v844, 7
        %v846 = vsub.s32 %v843, %v845
        %v847 = vrot.slane %v833, %v846
        %v848 = vcombine.high %v824, 0.0
        %v849 = vcombine.high %v831, 0.0
        %v850 = vcombine.high %v840, 0.0
        %v851 = vcombine.high %v847, 0.0
        %v852 = vcombine.low %v824, %v831
        %v854 = vunpack.c.l.s4 1983009808
        %v855 = vunpack.c.0.s8 %v854
        %v856 = vlaneseq
        %v857 = vshrl.u32 %v856, 7
        %v858 = vsub.s32 %v855, %v857
        %v859 = vrot.slane %v852, %v858
        %v860 = vcombine.low %v848, %v849
        %v862 = vunpack.c.l.s4 1983009808
        %v863 = vunpack.c.0.s8 %v862
        %v864 = vlaneseq
        %v865 = vshrl.u32 %v864, 7
        %v866 = vsub.s32 %v863, %v865
        %v867 = vrot.slane %v860, %v866
        %v868 = vcombine.low %v840, %v847
        %v870 = vunpack.c.l.s4 1983009808
        %v871 = vunpack.c.0.s8 %v870
        %v872 = vlaneseq
        %v873 = vshrl.u32 %v872, 7
        %v874 = vsub.s32 %v871, %v873
        %v875 = vrot.slane %v868, %v874
        %v876 = vcombine.low %v850, %v851
        %v878 = vunpack.c.l.s4 1983009808
        %v879 = vunpack.c.0.s8 %v878
        %v880 = vlaneseq
        %v881 = vshrl.u32 %v880, 7
        %v882 = vsub.s32 %v879, %v881
        %v883 = vrot.slane %v876, %v882
        %v884 = vcombine.low %v859, %v867
        %v885 = vcombine.high %v859, %v867
        %v887 = vunpack.c.l.s4 1934713408
        %v888 = vunpack.c.0.s8 %v887
        %v889 = vlaneseq
        %v890 = vshrl.u32 %v889, 7
        %v891 = vsub.s32 %v888, %v890
        %v892 = vrot.slane %v884, %v891
        %v894 = vunpack.c.l.s4 1934713408
        %v895 = vunpack.c.0.s8 %v894
        %v896 = vlaneseq
        %v897 = vshrl.u32 %v896, 7
        %v898 = vsub.s32 %v895, %v897
        %v899 = vrot.slane %v885, %v898
        %v900 = vcombine.low %v875, %v883
        %v901 = vcombine.high %v875, %v883
        %v903 = vunpack.c.l.s4 1934713408
        %v904 = vunpack.c.0.s8 %v903
        %v905 = vlaneseq
        %v906 = vshrl.u32 %v905, 7
        %v907 = vsub.s32 %v904, %v906
        %v908 = vrot.slane %v900, %v907
        %v910 = vunpack.c.l.s4 1934713408
        %v911 = vunpack.c.0.s8 %v910
        %v912 = vlaneseq
        %v913 = vshrl.u32 %v912, 7
        %v914 = vsub.s32 %v911, %v913
        %v915 = vrot.slane %v901, %v914
        %v916 = vcombine.low %v892, %v908
        %v917 = vcombine.high %v892, %v908
        %v918 = vcombine.low %v899, %v915
        %v919 = vcombine.high %v899, %v915
        %v920 = vpack.c.bf16 %v916, %v916
        %v921 = vpack.c.bf16 %v917, %v917
        %v922 = vpack.c.bf16 %v918, %v918
        %v923 = vpack.c.bf16 %v919, %v919
        %925 = vrot.lane.b32.xlu0 %v709, 120
        %v926 = vpop.permute.xlu0 %925
        %928 = vrot.lane.b32.xlu0 %v709, 112
        %v929 = vpop.permute.xlu0 %928
        %931 = vrot.lane.b32.xlu0 %v709, 104
        %v932 = vpop.permute.xlu0 %931
        %v934 = vcombine.low %v709, %v929
        %v935 = vcombine.high %v709, %v929
        %v937 = vunpack.c.l.s4 1983009808
        %v938 = vunpack.c.0.s8 %v937
        %v939 = vlaneseq
        %v940 = vshrl.u32 %v939, 7
        %v941 = vsub.s32 %v938, %v940
        %v942 = vrot.slane %v934, %v941
        %v944 = vunpack.c.l.s4 1983009808
        %v945 = vunpack.c.0.s8 %v944
        %v946 = vlaneseq
        %v947 = vshrl.u32 %v946, 7
        %v948 = vsub.s32 %v945, %v947
        %v949 = vrot.slane %v935, %v948
        %v950 = vcombine.low %v926, %v932
        %v951 = vcombine.high %v926, %v932
        %v953 = vunpack.c.l.s4 1983009808
        %v954 = vunpack.c.0.s8 %v953
        %v955 = vlaneseq
        %v956 = vshrl.u32 %v955, 7
        %v957 = vsub.s32 %v954, %v956
        %v958 = vrot.slane %v950, %v957
        %v960 = vunpack.c.l.s4 1983009808
        %v961 = vunpack.c.0.s8 %v960
        %v962 = vlaneseq
        %v963 = vshrl.u32 %v962, 7
        %v964 = vsub.s32 %v961, %v963
        %v965 = vrot.slane %v951, %v964
        %v966 = vcombine.low %v942, %v958
        %v967 = vcombine.high %v942, %v958
        %v969 = vunpack.c.l.s4 1934713408
        %v970 = vunpack.c.0.s8 %v969
        %v971 = vlaneseq
        %v972 = vshrl.u32 %v971, 7
        %v973 = vsub.s32 %v970, %v972
        %v974 = vrot.slane %v966, %v973
        %v976 = vunpack.c.l.s4 1934713408
        %v977 = vunpack.c.0.s8 %v976
        %v978 = vlaneseq
        %v979 = vshrl.u32 %v978, 7
        %v980 = vsub.s32 %v977, %v979
        %v981 = vrot.slane %v967, %v980
        %v982 = vcombine.low %v949, %v965
        %v983 = vcombine.high %v949, %v965
        %v985 = vunpack.c.l.s4 1934713408
        %v986 = vunpack.c.0.s8 %v985
        %v987 = vlaneseq
        %v988 = vshrl.u32 %v987, 7
        %v989 = vsub.s32 %v986, %v988
        %v990 = vrot.slane %v982, %v989
        %v992 = vunpack.c.l.s4 1934713408
        %v993 = vunpack.c.0.s8 %v992
        %v994 = vlaneseq
        %v995 = vshrl.u32 %v994, 7
        %v996 = vsub.s32 %v993, %v995
        %v997 = vrot.slane %v983, %v996
        %v998 = vcombine.high %v974, 0.0
        %v999 = vcombine.high %v981, 0.0
        %v1000 = vcombine.high %v990, 0.0
        %v1001 = vcombine.high %v997, 0.0
        %v1002 = vcombine.low %v974, %v981
        %v1004 = vunpack.c.l.s4 1983009808
        %v1005 = vunpack.c.0.s8 %v1004
        %v1006 = vlaneseq
        %v1007 = vshrl.u32 %v1006, 7
        %v1008 = vsub.s32 %v1005, %v1007
        %v1009 = vrot.slane %v1002, %v1008
        %v1010 = vcombine.low %v998, %v999
        %v1012 = vunpack.c.l.s4 1983009808
        %v1013 = vunpack.c.0.s8 %v1012
        %v1014 = vlaneseq
        %v1015 = vshrl.u32 %v1014, 7
        %v1016 = vsub.s32 %v1013, %v1015
        %v1017 = vrot.slane %v1010, %v1016
        %v1018 = vcombine.low %v990, %v997
        %v1020 = vunpack.c.l.s4 1983009808
        %v1021 = vunpack.c.0.s8 %v1020
        %v1022 = vlaneseq
        %v1023 = vshrl.u32 %v1022, 7
        %v1024 = vsub.s32 %v1021, %v1023
        %v1025 = vrot.slane %v1018, %v1024
        %v1026 = vcombine.low %v1000, %v1001
        %v1028 = vunpack.c.l.s4 1983009808
        %v1029 = vunpack.c.0.s8 %v1028
        %v1030 = vlaneseq
        %v1031 = vshrl.u32 %v1030, 7
        %v1032 = vsub.s32 %v1029, %v1031
        %v1033 = vrot.slane %v1026, %v1032
        %v1034 = vcombine.low %v1009, %v1017
        %v1035 = vcombine.high %v1009, %v1017
        %v1037 = vunpack.c.l.s4 1934713408
        %v1038 = vunpack.c.0.s8 %v1037
        %v1039 = vlaneseq
        %v1040 = vshrl.u32 %v1039, 7
        %v1041 = vsub.s32 %v1038, %v1040
        %v1042 = vrot.slane %v1034, %v1041
        %v1044 = vunpack.c.l.s4 1934713408
        %v1045 = vunpack.c.0.s8 %v1044
        %v1046 = vlaneseq
        %v1047 = vshrl.u32 %v1046, 7
        %v1048 = vsub.s32 %v1045, %v1047
        %v1049 = vrot.slane %v1035, %v1048
        %v1050 = vcombine.low %v1025, %v1033
        %v1051 = vcombine.high %v1025, %v1033
        %v1053 = vunpack.c.l.s4 1934713408
        %v1054 = vunpack.c.0.s8 %v1053
        %v1055 = vlaneseq
        %v1056 = vshrl.u32 %v1055, 7
        %v1057 = vsub.s32 %v1054, %v1056
        %v1058 = vrot.slane %v1050, %v1057
        %v1060 = vunpack.c.l.s4 1934713408
        %v1061 = vunpack.c.0.s8 %v1060
        %v1062 = vlaneseq
        %v1063 = vshrl.u32 %v1062, 7
        %v1064 = vsub.s32 %v1061, %v1063
        %v1065 = vrot.slane %v1051, %v1064
        %v1066 = vcombine.low %v1042, %v1058
        %v1067 = vcombine.high %v1042, %v1058
        %v1068 = vcombine.low %v1049, %v1065
        %v1069 = vcombine.high %v1049, %v1065
        %v1070 = vpack.c.bf16 %v1066, %v1066
        %v1071 = vpack.c.bf16 %v1067, %v1067
        %v1072 = vpack.c.bf16 %v1068, %v1068
        %v1073 = vpack.c.bf16 %v1069, %v1069
        %1075 = vrot.lane.b32.xlu0 %v769, 120
        %v1076 = vpop.permute.xlu0 %1075
        %1078 = vrot.lane.b32.xlu0 %v769, 112
        %v1079 = vpop.permute.xlu0 %1078
        %1081 = vrot.lane.b32.xlu0 %v769, 104
        %v1082 = vpop.permute.xlu0 %1081
        %v1084 = vcombine.low %v769, %v1079
        %v1085 = vcombine.high %v769, %v1079
        %v1087 = vunpack.c.l.s4 1983009808
        %v1088 = vunpack.c.0.s8 %v1087
        %v1089 = vlaneseq
        %v1090 = vshrl.u32 %v1089, 7
        %v1091 = vsub.s32 %v1088, %v1090
        %v1092 = vrot.slane %v1084, %v1091
        %v1094 = vunpack.c.l.s4 1983009808
        %v1095 = vunpack.c.0.s8 %v1094
        %v1096 = vlaneseq
        %v1097 = vshrl.u32 %v1096, 7
        %v1098 = vsub.s32 %v1095, %v1097
        %v1099 = vrot.slane %v1085, %v1098
        %v1100 = vcombine.low %v1076, %v1082
        %v1101 = vcombine.high %v1076, %v1082
        %v1103 = vunpack.c.l.s4 1983009808
        %v1104 = vunpack.c.0.s8 %v1103
        %v1105 = vlaneseq
        %v1106 = vshrl.u32 %v1105, 7
        %v1107 = vsub.s32 %v1104, %v1106
        %v1108 = vrot.slane %v1100, %v1107
        %v1110 = vunpack.c.l.s4 1983009808
        %v1111 = vunpack.c.0.s8 %v1110
        %v1112 = vlaneseq
        %v1113 = vshrl.u32 %v1112, 7
        %v1114 = vsub.s32 %v1111, %v1113
        %v1115 = vrot.slane %v1101, %v1114
        %v1116 = vcombine.low %v1092, %v1108
        %v1117 = vcombine.high %v1092, %v1108
        %v1119 = vunpack.c.l.s4 1934713408
        %v1120 = vunpack.c.0.s8 %v1119
        %v1121 = vlaneseq
        %v1122 = vshrl.u32 %v1121, 7
        %v1123 = vsub.s32 %v1120, %v1122
        %v1124 = vrot.slane %v1116, %v1123
        %v1126 = vunpack.c.l.s4 1934713408
        %v1127 = vunpack.c.0.s8 %v1126
        %v1128 = vlaneseq
        %v1129 = vshrl.u32 %v1128, 7
        %v1130 = vsub.s32 %v1127, %v1129
        %v1131 = vrot.slane %v1117, %v1130
        %v1132 = vcombine.low %v1099, %v1115
        %v1133 = vcombine.high %v1099, %v1115
        %v1135 = vunpack.c.l.s4 1934713408
        %v1136 = vunpack.c.0.s8 %v1135
        %v1137 = vlaneseq
        %v1138 = vshrl.u32 %v1137, 7
        %v1139 = vsub.s32 %v1136, %v1138
        %v1140 = vrot.slane %v1132, %v1139
        %v1142 = vunpack.c.l.s4 1934713408
        %v1143 = vunpack.c.0.s8 %v1142
        %v1144 = vlaneseq
        %v1145 = vshrl.u32 %v1144, 7
        %v1146 = vsub.s32 %v1143, %v1145
        %v1147 = vrot.slane %v1133, %v1146
        %v1148 = vcombine.high %v1124, 0.0
        %v1149 = vcombine.high %v1131, 0.0
        %v1150 = vcombine.high %v1140, 0.0
        %v1151 = vcombine.high %v1147, 0.0
        %v1152 = vcombine.low %v1124, %v1131
        %v1154 = vunpack.c.l.s4 1983009808
        %v1155 = vunpack.c.0.s8 %v1154
        %v1156 = vlaneseq
        %v1157 = vshrl.u32 %v1156, 7
        %v1158 = vsub.s32 %v1155, %v1157
        %v1159 = vrot.slane %v1152, %v1158
        %v1160 = vcombine.low %v1148, %v1149
        %v1162 = vunpack.c.l.s4 1983009808
        %v1163 = vunpack.c.0.s8 %v1162
        %v1164 = vlaneseq
        %v1165 = vshrl.u32 %v1164, 7
        %v1166 = vsub.s32 %v1163, %v1165
        %v1167 = vrot.slane %v1160, %v1166
        %v1168 = vcombine.low %v1140, %v1147
        %v1170 = vunpack.c.l.s4 1983009808
        %v1171 = vunpack.c.0.s8 %v1170
        %v1172 = vlaneseq
        %v1173 = vshrl.u32 %v1172, 7
        %v1174 = vsub.s32 %v1171, %v1173
        %v1175 = vrot.slane %v1168, %v1174
        %v1176 = vcombine.low %v1150, %v1151
        %v1178 = vunpack.c.l.s4 1983009808
        %v1179 = vunpack.c.0.s8 %v1178
        %v1180 = vlaneseq
        %v1181 = vshrl.u32 %v1180, 7
        %v1182 = vsub.s32 %v1179, %v1181
        %v1183 = vrot.slane %v1176, %v1182
        %v1184 = vcombine.low %v1159, %v1167
        %v1185 = vcombine.high %v1159, %v1167
        %v1187 = vunpack.c.l.s4 1934713408
        %v1188 = vunpack.c.0.s8 %v1187
        %v1189 = vlaneseq
        %v1190 = vshrl.u32 %v1189, 7
        %v1191 = vsub.s32 %v1188, %v1190
        %v1192 = vrot.slane %v1184, %v1191
        %v1194 = vunpack.c.l.s4 1934713408
        %v1195 = vunpack.c.0.s8 %v1194
        %v1196 = vlaneseq
        %v1197 = vshrl.u32 %v1196, 7
        %v1198 = vsub.s32 %v1195, %v1197
        %v1199 = vrot.slane %v1185, %v1198
        %v1200 = vcombine.low %v1175, %v1183
        %v1201 = vcombine.high %v1175, %v1183
        %v1203 = vunpack.c.l.s4 1934713408
        %v1204 = vunpack.c.0.s8 %v1203
        %v1205 = vlaneseq
        %v1206 = vshrl.u32 %v1205, 7
        %v1207 = vsub.s32 %v1204, %v1206
        %v1208 = vrot.slane %v1200, %v1207
        %v1210 = vunpack.c.l.s4 1934713408
        %v1211 = vunpack.c.0.s8 %v1210
        %v1212 = vlaneseq
        %v1213 = vshrl.u32 %v1212, 7
        %v1214 = vsub.s32 %v1211, %v1213
        %v1215 = vrot.slane %v1201, %v1214
        %v1216 = vcombine.low %v1192, %v1208
        %v1217 = vcombine.high %v1192, %v1208
        %v1218 = vcombine.low %v1199, %v1215
        %v1219 = vcombine.high %v1199, %v1215
        %v1220 = vpack.c.bf16 %v1216, %v1216
        %v1221 = vpack.c.bf16 %v1217, %v1217
        %v1222 = vpack.c.bf16 %v1218, %v1218
        %v1223 = vpack.c.bf16 %v1219, %v1219
        %vm1224 = vcmask 64512
        %v1226 = vsel %vm1224, %v920, 0
        %v1229 = vsel %vm1224, %v1070, 0
        %1231 = vmatprep.subr.bf16.mxu0 0
        %1232 = vmatpush1.bf16.xpose.msra.mxu0 0
        %1233 = vmatprep.subr.bf16.mxu0 0
        %1234 = vmatpush1.bf16.xpose.msra.mxu0 0
        %1235 = vmatprep.subr.bf16.mxu0 0
        %1236 = vmatpush1.bf16.xpose.msra.mxu0 0
        %1237 = vmatprep.subr.bf16.mxu0 0
        %1238 = vmatpush1.bf16.xpose.msra.mxu0 0
        %1239 = vmatprep.subr.bf16.mxu0 0
        %1240 = vmatpush1.bf16.xpose.msra.mxu0 0
        %1241 = vmatprep.subr.bf16.mxu0 0
        %1242 = vmatpush1.bf16.xpose.msra.mxu0 0
        %1243 = vmatprep.subr.bf16.mxu0 0
        %1244 = vmatpush1.bf16.xpose.msra.mxu0 0
        %1245 = vmatprep.subr.bf16.mxu0 0
        %1246 = vmatpush1.bf16.xpose.msra.mxu0 %v1229
        %1247 = vmatprep.subr.bf16.mxu0 0
        %1248 = vmatpush2.bf16.xpose.msra.mxu0 0
        %1249 = vmatprep.subr.bf16.mxu0 0
        %1250 = vmatpush2.bf16.xpose.msra.mxu0 0
        %1251 = vmatprep.subr.bf16.mxu0 0
        %1252 = vmatpush2.bf16.xpose.msra.mxu0 0
        %1253 = vmatprep.subr.bf16.mxu0 0
        %1254 = vmatpush2.bf16.xpose.msra.mxu0 0
        %1255 = vmatprep.subr.bf16.mxu0 0
        %1256 = vmatpush2.bf16.xpose.msra.mxu0 0
        %1257 = vmatprep.subr.bf16.mxu0 0
        %1258 = vmatpush2.bf16.xpose.msra.mxu0 0
        %1259 = vmatprep.subr.bf16.mxu0 0
        %1260 = vmatpush2.bf16.xpose.msra.mxu0 0
        %1261 = vmatprep.subr.bf16.mxu0 0
        %1262 = vmatpush2.bf16.xpose.msra.mxu0 0
        %1263 = vmatprep.mubr.bf16.mxu0 0
        %1264 = vmatmul.mubr.bf16.gmra.mxu0 %v1226
        %v1265 = vpop.f32.mrf.mxu0
        %v1266 = vadd.f32 0.0, %v1265
        %v1267 = vpop.f32.mrf.mxu0
        %v1268 = vpop.f32.mrf.mxu0
        %v1269 = vpop.f32.mrf.mxu0
        %1270 = vdwg.mxu0
        %v1272 = vsel %vm1224, %v921, 0
        %v1275 = vsel %vm1224, %v1071, 0
        %1277 = vmatprep.subr.bf16.mxu0 0
        %1278 = vmatpush1.bf16.xpose.msra.mxu0 0
        %1279 = vmatprep.subr.bf16.mxu0 0
        %1280 = vmatpush1.bf16.xpose.msra.mxu0 0
        %1281 = vmatprep.subr.bf16.mxu0 0
        %1282 = vmatpush1.bf16.xpose.msra.mxu0 0
        %1283 = vmatprep.subr.bf16.mxu0 0
        %1284 = vmatpush1.bf16.xpose.msra.mxu0 0
        %1285 = vmatprep.subr.bf16.mxu0 0
        %1286 = vmatpush1.bf16.xpose.msra.mxu0 0
        %1287 = vmatprep.subr.bf16.mxu0 0
        %1288 = vmatpush1.bf16.xpose.msra.mxu0 0
        %1289 = vmatprep.subr.bf16.mxu0 0
        %1290 = vmatpush1.bf16.xpose.msra.mxu0 0
        %1291 = vmatprep.subr.bf16.mxu0 0
        %1292 = vmatpush1.bf16.xpose.msra.mxu0 %v1275
        %1293 = vmatprep.subr.bf16.mxu0 0
        %1294 = vmatpush2.bf16.xpose.msra.mxu0 0
        %1295 = vmatprep.subr.bf16.mxu0 0
        %1296 = vmatpush2.bf16.xpose.msra.mxu0 0
        %1297 = vmatprep.subr.bf16.mxu0 0
        %1298 = vmatpush2.bf16.xpose.msra.mxu0 0
        %1299 = vmatprep.subr.bf16.mxu0 0
        %1300 = vmatpush2.bf16.xpose.msra.mxu0 0
        %1301 = vmatprep.subr.bf16.mxu0 0
        %1302 = vmatpush2.bf16.xpose.msra.mxu0 0
        %1303 = vmatprep.subr.bf16.mxu0 0
        %1304 = vmatpush2.bf16.xpose.msra.mxu0 0
        %1305 = vmatprep.subr.bf16.mxu0 0
        %1306 = vmatpush2.bf16.xpose.msra.mxu0 0
        %1307 = vmatprep.subr.bf16.mxu0 0
        %1308 = vmatpush2.bf16.xpose.msra.mxu0 0
        %1309 = vmatprep.mubr.bf16.mxu0 0
        %1310 = vmatmul.mubr.bf16.gmra.mxu0 %v1272
        %v1311 = vpop.f32.mrf.mxu0
        %v1312 = vadd.f32 0.0, %v1311
        %v1313 = vpop.f32.mrf.mxu0
        %v1314 = vpop.f32.mrf.mxu0
        %v1315 = vpop.f32.mrf.mxu0
        %1316 = vdwg.mxu0
        %v1318 = vsel %vm1224, %v922, 0
        %v1321 = vsel %vm1224, %v1072, 0
        %1323 = vmatprep.subr.bf16.mxu0 0
        %1324 = vmatpush1.bf16.xpose.msra.mxu0 0
        %1325 = vmatprep.subr.bf16.mxu0 0
        %1326 = vmatpush1.bf16.xpose.msra.mxu0 0
        %1327 = vmatprep.subr.bf16.mxu0 0
        %1328 = vmatpush1.bf16.xpose.msra.mxu0 0
        %1329 = vmatprep.subr.bf16.mxu0 0
        %1330 = vmatpush1.bf16.xpose.msra.mxu0 0
        %1331 = vmatprep.subr.bf16.mxu0 0
        %1332 = vmatpush1.bf16.xpose.msra.mxu0 0
        %1333 = vmatprep.subr.bf16.mxu0 0
        %1334 = vmatpush1.bf16.xpose.msra.mxu0 0
        %1335 = vmatprep.subr.bf16.mxu0 0
        %1336 = vmatpush1.bf16.xpose.msra.mxu0 0
        %1337 = vmatprep.subr.bf16.mxu0 0
        %1338 = vmatpush1.bf16.xpose.msra.mxu0 %v1321
        %1339 = vmatprep.subr.bf16.mxu0 0
        %1340 = vmatpush2.bf16.xpose.msra.mxu0 0
        %1341 = vmatprep.subr.bf16.mxu0 0
        %1342 = vmatpush2.bf16.xpose.msra.mxu0 0
        %1343 = vmatprep.subr.bf16.mxu0 0
        %1344 = vmatpush2.bf16.xpose.msra.mxu0 0
        %1345 = vmatprep.subr.bf16.mxu0 0
        %1346 = vmatpush2.bf16.xpose.msra.mxu0 0
        %1347 = vmatprep.subr.bf16.mxu0 0
        %1348 = vmatpush2.bf16.xpose.msra.mxu0 0
        %1349 = vmatprep.subr.bf16.mxu0 0
        %1350 = vmatpush2.bf16.xpose.msra.mxu0 0
        %1351 = vmatprep.subr.bf16.mxu0 0
        %1352 = vmatpush2.bf16.xpose.msra.mxu0 0
        %1353 = vmatprep.subr.bf16.mxu0 0
        %1354 = vmatpush2.bf16.xpose.msra.mxu0 0
        %1355 = vmatprep.mubr.bf16.mxu0 0
        %1356 = vmatmul.mubr.bf16.gmra.mxu0 %v1318
        %v1357 = vpop.f32.mrf.mxu0
        %v1358 = vadd.f32 0.0, %v1357
        %v1359 = vpop.f32.mrf.mxu0
        %v1360 = vpop.f32.mrf.mxu0
        %v1361 = vpop.f32.mrf.mxu0
        %1362 = vdwg.mxu0
        %v1364 = vsel %vm1224, %v923, 0
        %v1367 = vsel %vm1224, %v1073, 0
        %1369 = vmatprep.subr.bf16.mxu0 0
        %1370 = vmatpush1.bf16.xpose.msra.mxu0 0
        %1371 = vmatprep.subr.bf16.mxu0 0
        %1372 = vmatpush1.bf16.xpose.msra.mxu0 0
        %1373 = vmatprep.subr.bf16.mxu0 0
        %1374 = vmatpush1.bf16.xpose.msra.mxu0 0
        %1375 = vmatprep.subr.bf16.mxu0 0
        %1376 = vmatpush1.bf16.xpose.msra.mxu0 0
        %1377 = vmatprep.subr.bf16.mxu0 0
        %1378 = vmatpush1.bf16.xpose.msra.mxu0 0
        %1379 = vmatprep.subr.bf16.mxu0 0
        %1380 = vmatpush1.bf16.xpose.msra.mxu0 0
        %1381 = vmatprep.subr.bf16.mxu0 0
        %1382 = vmatpush1.bf16.xpose.msra.mxu0 0
        %1383 = vmatprep.subr.bf16.mxu0 0
        %1384 = vmatpush1.bf16.xpose.msra.mxu0 %v1367
        %1385 = vmatprep.subr.bf16.mxu0 0
        %1386 = vmatpush2.bf16.xpose.msra.mxu0 0
        %1387 = vmatprep.subr.bf16.mxu0 0
        %1388 = vmatpush2.bf16.xpose.msra.mxu0 0
        %1389 = vmatprep.subr.bf16.mxu0 0
        %1390 = vmatpush2.bf16.xpose.msra.mxu0 0
        %1391 = vmatprep.subr.bf16.mxu0 0
        %1392 = vmatpush2.bf16.xpose.msra.mxu0 0
        %1393 = vmatprep.subr.bf16.mxu0 0
        %1394 = vmatpush2.bf16.xpose.msra.mxu0 0
        %1395 = vmatprep.subr.bf16.mxu0 0
        %1396 = vmatpush2.bf16.xpose.msra.mxu0 0
        %1397 = vmatprep.subr.bf16.mxu0 0
        %1398 = vmatpush2.bf16.xpose.msra.mxu0 0
        %1399 = vmatprep.subr.bf16.mxu0 0
        %1400 = vmatpush2.bf16.xpose.msra.mxu0 0
        %1401 = vmatprep.mubr.bf16.mxu0 0
        %1402 = vmatmul.mubr.bf16.gmra.mxu0 %v1364
        %v1403 = vpop.f32.mrf.mxu0
        %v1404 = vadd.f32 0.0, %v1403
        %v1405 = vpop.f32.mrf.mxu0
        %v1406 = vpop.f32.mrf.mxu0
        %v1407 = vpop.f32.mrf.mxu0
        %1408 = vdwg.mxu0
        %v1409 = vld [vmem:[%s588] sm:$0x3]
        %v1410 = vunpack.c.0.s8 %v1409
        %v1411 = vcvt.s32.f32 %v1410
        %v1412 = vmul.f32 %v1411, -1e+09
        %v1413 = vmul.f32 %v1266, 0.35355338
        %v1414 = vmul.f32 %v1312, 0.35355338
        %v1415 = vmul.f32 %v1358, 0.35355338
        %v1416 = vmul.f32 %v1404, 0.35355338
        %v1417 = vadd.f32 %v1413, %v1412
        %v1418 = vadd.f32 %v1414, %v1412
        %v1419 = vadd.f32 %v1415, %v1412
        %v1420 = vadd.f32 %v1416, %v1412
        %v1421 = vsel %vm1224, %v1417, -inf
        %1422 = vmax.xlane.f32.xlu0 %v1421
        %v1423 = vpop.xlane.xlu0 %1422
        %v1424 = vsel %vm1224, %v1418, -inf
        %1425 = vmax.xlane.f32.xlu0 %v1424
        %v1426 = vpop.xlane.xlu0 %1425
        %v1427 = vsel %vm1224, %v1419, -inf
        %1428 = vmax.xlane.f32.xlu0 %v1427
        %v1429 = vpop.xlane.xlu0 %1428
        %v1430 = vsel %vm1224, %v1420, -inf
        %1431 = vmax.xlane.f32.xlu0 %v1430
        %v1432 = vpop.xlane.xlu0 %1431
        %v1433 = vsub.f32 %v1417, %v1423
        %v1434 = vsub.f32 %v1418, %v1426
        %v1435 = vsub.f32 %v1419, %v1429
        %v1436 = vsub.f32 %v1420, %v1432
        %v1437 = vmul.f32 %v1433, 1.442695
        %v1438 = vpow.pop %v1437
        %v1439 = vmul.f32 %v1434, 1.442695
        %v1440 = vpow.pop %v1439
        %v1441 = vmul.f32 %v1435, 1.442695
        %v1442 = vpow.pop %v1441
        %v1443 = vmul.f32 %v1436, 1.442695
        %v1444 = vpow.pop %v1443
        %v1445 = vsel %vm1224, %v1438, 0.0
        %1446 = vadd.xlane.f32.xlu0 %v1445
        %v1447 = vpop.xlane.xlu0 %1446
        %v1448 = vsel %vm1224, %v1440, 0.0
        %1449 = vadd.xlane.f32.xlu0 %v1448
        %v1450 = vpop.xlane.xlu0 %1449
        %v1451 = vsel %vm1224, %v1442, 0.0
        %1452 = vadd.xlane.f32.xlu0 %v1451
        %v1453 = vpop.xlane.xlu0 %1452
        %v1454 = vsel %vm1224, %v1444, 0.0
        %1455 = vadd.xlane.f32.xlu0 %v1454
        %v1456 = vpop.xlane.xlu0 %1455
        %v1457 = vrcp.pop %v1447
        %v1458 = vrcp.pop %v1450
        %v1459 = vrcp.pop %v1453
        %v1460 = vrcp.pop %v1456
        %v1461 = vmul.f32 %v1438, %v1457
        %v1462 = vmul.f32 %v1440, %v1458
        %v1463 = vmul.f32 %v1442, %v1459
        %v1464 = vmul.f32 %v1444, %v1460
        %1465 = vst.msk [vmem:[%s581] sm:$0xff] %vm1224, %v1461
        %1466 = vst.msk [vmem:[%s581 + $0x8] sm:$0xff] %vm1224, %v1462
        %1467 = vst.msk [vmem:[%s581 + $0x10] sm:$0xff] %vm1224, %v1463
        %1468 = vst.msk [vmem:[%s581 + $0x18] sm:$0xff] %vm1224, %v1464
        %v1469 = vpack.c.bf16 %v1461, %v1461
        %v1470 = vpack.c.bf16 %v1462, %v1462
        %v1471 = vpack.c.bf16 %v1463, %v1463
        %v1472 = vpack.c.bf16 %v1464, %v1464
        %v1474 = vsel %vm1224, %v1469, 0
        %vm1476 = vcmask 1043456
        %v1478 = vsel %vm1476, %v1220, 0
        %1480 = vmatprep.subr.bf16.mxu0 0
        %1481 = vmatpush1.bf16.msra.mxu0 0
        %1482 = vmatprep.subr.bf16.mxu0 0
        %1483 = vmatpush1.bf16.msra.mxu0 0
        %1484 = vmatprep.subr.bf16.mxu0 0
        %1485 = vmatpush1.bf16.msra.mxu0 0
        %1486 = vmatprep.subr.bf16.mxu0 0
        %1487 = vmatpush1.bf16.msra.mxu0 0
        %1488 = vmatprep.subr.bf16.mxu0 0
        %1489 = vmatpush1.bf16.msra.mxu0 0
        %1490 = vmatprep.subr.bf16.mxu0 0
        %1491 = vmatpush1.bf16.msra.mxu0 0
        %1492 = vmatprep.subr.bf16.mxu0 0
        %1493 = vmatpush1.bf16.msra.mxu0 0
        %1494 = vmatprep.subr.bf16.mxu0 0
        %1495 = vmatpush1.bf16.msra.mxu0 %v1478
        %1496 = vmatprep.subr.bf16.mxu0 0
        %1497 = vmatpush2.bf16.msra.mxu0 0
        %1498 = vmatprep.subr.bf16.mxu0 0
        %1499 = vmatpush2.bf16.msra.mxu0 0
        %1500 = vmatprep.subr.bf16.mxu0 0
        %1501 = vmatpush2.bf16.msra.mxu0 0
        %1502 = vmatprep.subr.bf16.mxu0 0
        %1503 = vmatpush2.bf16.msra.mxu0 0
        %1504 = vmatprep.subr.bf16.mxu0 0
        %1505 = vmatpush2.bf16.msra.mxu0 0
        %1506 = vmatprep.subr.bf16.mxu0 0
        %1507 = vmatpush2.bf16.msra.mxu0 0
        %1508 = vmatprep.subr.bf16.mxu0 0
        %1509 = vmatpush2.bf16.msra.mxu0 0
        %1510 = vmatprep.subr.bf16.mxu0 0
        %1511 = vmatpush2.bf16.msra.mxu0 0
        %1512 = vmatprep.mubr.bf16.mxu0 0
        %1513 = vmatmul.mubr.bf16.gmra.mxu0 %v1474
        %v1514 = vpop.f32.mrf.mxu0
        %v1515 = vadd.f32 0.0, %v1514
        %v1516 = vpop.f32.mrf.mxu0
        %v1517 = vpop.f32.mrf.mxu0
        %v1518 = vpop.f32.mrf.mxu0
        %1519 = vdwg.mxu0
        %v1521 = vsel %vm1224, %v1470, 0
        %v1524 = vsel %vm1476, %v1221, 0
        %1526 = vmatprep.subr.bf16.mxu0 0
        %1527 = vmatpush1.bf16.msra.mxu0 0
        %1528 = vmatprep.subr.bf16.mxu0 0
        %1529 = vmatpush1.bf16.msra.mxu0 0
        %1530 = vmatprep.subr.bf16.mxu0 0
        %1531 = vmatpush1.bf16.msra.mxu0 0
        %1532 = vmatprep.subr.bf16.mxu0 0
        %1533 = vmatpush1.bf16.msra.mxu0 0
        %1534 = vmatprep.subr.bf16.mxu0 0
        %1535 = vmatpush1.bf16.msra.mxu0 0
        %1536 = vmatprep.subr.bf16.mxu0 0
        %1537 = vmatpush1.bf16.msra.mxu0 0
        %1538 = vmatprep.subr.bf16.mxu0 0
        %1539 = vmatpush1.bf16.msra.mxu0 0
        %1540 = vmatprep.subr.bf16.mxu0 0
        %1541 = vmatpush1.bf16.msra.mxu0 %v1524
        %1542 = vmatprep.subr.bf16.mxu0 0
        %1543 = vmatpush2.bf16.msra.mxu0 0
        %1544 = vmatprep.subr.bf16.mxu0 0
        %1545 = vmatpush2.bf16.msra.mxu0 0
        %1546 = vmatprep.subr.bf16.mxu0 0
        %1547 = vmatpush2.bf16.msra.mxu0 0
        %1548 = vmatprep.subr.bf16.mxu0 0
        %1549 = vmatpush2.bf16.msra.mxu0 0
        %1550 = vmatprep.subr.bf16.mxu0 0
        %1551 = vmatpush2.bf16.msra.mxu0 0
        %1552 = vmatprep.subr.bf16.mxu0 0
        %1553 = vmatpush2.bf16.msra.mxu0 0
        %1554 = vmatprep.subr.bf16.mxu0 0
        %1555 = vmatpush2.bf16.msra.mxu0 0
        %1556 = vmatprep.subr.bf16.mxu0 0
        %1557 = vmatpush2.bf16.msra.mxu0 0
        %1558 = vmatprep.mubr.bf16.mxu0 0
        %1559 = vmatmul.mubr.bf16.gmra.mxu0 %v1521
        %v1560 = vpop.f32.mrf.mxu0
        %v1561 = vadd.f32 0.0, %v1560
        %v1562 = vpop.f32.mrf.mxu0
        %v1563 = vpop.f32.mrf.mxu0
        %v1564 = vpop.f32.mrf.mxu0
        %1565 = vdwg.mxu0
        %v1567 = vsel %vm1224, %v1471, 0
        %v1570 = vsel %vm1476, %v1222, 0
        %1572 = vmatprep.subr.bf16.mxu0 0
        %1573 = vmatpush1.bf16.msra.mxu0 0
        %1574 = vmatprep.subr.bf16.mxu0 0
        %1575 = vmatpush1.bf16.msra.mxu0 0
        %1576 = vmatprep.subr.bf16.mxu0 0
        %1577 = vmatpush1.bf16.msra.mxu0 0
        %1578 = vmatprep.subr.bf16.mxu0 0
        %1579 = vmatpush1.bf16.msra.mxu0 0
        %1580 = vmatprep.subr.bf16.mxu0 0
        %1581 = vmatpush1.bf16.msra.mxu0 0
        %1582 = vmatprep.subr.bf16.mxu0 0
        %1583 = vmatpush1.bf16.msra.mxu0 0
        %1584 = vmatprep.subr.bf16.mxu0 0
        %1585 = vmatpush1.bf16.msra.mxu0 0
        %1586 = vmatprep.subr.bf16.mxu0 0
        %1587 = vmatpush1.bf16.msra.mxu0 %v1570
        %1588 = vmatprep.subr.bf16.mxu0 0
        %1589 = vmatpush2.bf16.msra.mxu0 0
        %1590 = vmatprep.subr.bf16.mxu0 0
        %1591 = vmatpush2.bf16.msra.mxu0 0
        %1592 = vmatprep.subr.bf16.mxu0 0
        %1593 = vmatpush2.bf16.msra.mxu0 0
        %1594 = vmatprep.subr.bf16.mxu0 0
        %1595 = vmatpush2.bf16.msra.mxu0 0
        %1596 = vmatprep.subr.bf16.mxu0 0
        %1597 = vmatpush2.bf16.msra.mxu0 0
        %1598 = vmatprep.subr.bf16.mxu0 0
        %1599 = vmatpush2.bf16.msra.mxu0 0
        %1600 = vmatprep.subr.bf16.mxu0 0
        %1601 = vmatpush2.bf16.msra.mxu0 0
        %1602 = vmatprep.subr.bf16.mxu0 0
        %1603 = vmatpush2.bf16.msra.mxu0 0
        %1604 = vmatprep.mubr.bf16.mxu0 0
        %1605 = vmatmul.mubr.bf16.gmra.mxu0 %v1567
        %v1606 = vpop.f32.mrf.mxu0
        %v1607 = vadd.f32 0.0, %v1606
        %v1608 = vpop.f32.mrf.mxu0
        %v1609 = vpop.f32.mrf.mxu0
        %v1610 = vpop.f32.mrf.mxu0
        %1611 = vdwg.mxu0
        %v1613 = vsel %vm1224, %v1472, 0
        %v1616 = vsel %vm1476, %v1223, 0
        %1618 = vmatprep.subr.bf16.mxu0 0
        %1619 = vmatpush1.bf16.msra.mxu0 0
        %1620 = vmatprep.subr.bf16.mxu0 0
        %1621 = vmatpush1.bf16.msra.mxu0 0
        %1622 = vmatprep.subr.bf16.mxu0 0
        %1623 = vmatpush1.bf16.msra.mxu0 0
        %1624 = vmatprep.subr.bf16.mxu0 0
        %1625 = vmatpush1.bf16.msra.mxu0 0
        %1626 = vmatprep.subr.bf16.mxu0 0
        %1627 = vmatpush1.bf16.msra.mxu0 0
        %1628 = vmatprep.subr.bf16.mxu0 0
        %1629 = vmatpush1.bf16.msra.mxu0 0
        %1630 = vmatprep.subr.bf16.mxu0 0
        %1631 = vmatpush1.bf16.msra.mxu0 0
        %1632 = vmatprep.subr.bf16.mxu0 0
        %1633 = vmatpush1.bf16.msra.mxu0 %v1616
        %1634 = vmatprep.subr.bf16.mxu0 0
        %1635 = vmatpush2.bf16.msra.mxu0 0
        %1636 = vmatprep.subr.bf16.mxu0 0
        %1637 = vmatpush2.bf16.msra.mxu0 0
        %1638 = vmatprep.subr.bf16.mxu0 0
        %1639 = vmatpush2.bf16.msra.mxu0 0
        %1640 = vmatprep.subr.bf16.mxu0 0
        %1641 = vmatpush2.bf16.msra.mxu0 0
        %1642 = vmatprep.subr.bf16.mxu0 0
        %1643 = vmatpush2.bf16.msra.mxu0 0
        %1644 = vmatprep.subr.bf16.mxu0 0
        %1645 = vmatpush2.bf16.msra.mxu0 0
        %1646 = vmatprep.subr.bf16.mxu0 0
        %1647 = vmatpush2.bf16.msra.mxu0 0
        %1648 = vmatprep.subr.bf16.mxu0 0
        %1649 = vmatpush2.bf16.msra.mxu0 0
        %1650 = vmatprep.mubr.bf16.mxu0 0
        %1651 = vmatmul.mubr.bf16.gmra.mxu0 %v1613
        %v1652 = vpop.f32.mrf.mxu0
        %v1653 = vadd.f32 0.0, %v1652
        %v1654 = vpop.f32.mrf.mxu0
        %v1655 = vpop.f32.mrf.mxu0
        %v1656 = vpop.f32.mrf.mxu0
        %1657 = vdwg.mxu0
        %v1658 = vpack.c.bf16 %v1515, %v1515
        %v1659 = vpack.c.bf16 %v1561, %v1561
        %v1660 = vpack.c.bf16 %v1607, %v1607
        %v1661 = vpack.c.bf16 %v1653, %v1653
        %v1662 = vld [vmem:[#allocation13] sm:$0xf]
        %v1663 = vld [vmem:[#allocation13 + $0x4] sm:$0xf]
        %v1664 = vld [vmem:[#allocation13 + $0x8] sm:$0xf]
        %v1665 = vld [vmem:[#allocation13 + $0xc] sm:$0xf]
        %v1667 = vsel %vm1224, %v1658, 0
        %v1670 = vsel %vm1476, %v1662, 0
        %1672 = vmatprep.subr.bf16.mxu0 0
        %1673 = vmatpush1.bf16.msra.mxu0 0
        %1674 = vmatprep.subr.bf16.mxu0 0
        %1675 = vmatpush1.bf16.msra.mxu0 0
        %1676 = vmatprep.subr.bf16.mxu0 0
        %1677 = vmatpush1.bf16.msra.mxu0 0
        %1678 = vmatprep.subr.bf16.mxu0 0
        %1679 = vmatpush1.bf16.msra.mxu0 0
        %1680 = vmatprep.subr.bf16.mxu0 0
        %1681 = vmatpush1.bf16.msra.mxu0 0
        %1682 = vmatprep.subr.bf16.mxu0 0
        %1683 = vmatpush1.bf16.msra.mxu0 0
        %1684 = vmatprep.subr.bf16.mxu0 0
        %1685 = vmatpush1.bf16.msra.mxu0 0
        %1686 = vmatprep.subr.bf16.mxu0 0
        %1687 = vmatpush1.bf16.msra.mxu0 %v1670
        %1688 = vmatprep.subr.bf16.mxu0 0
        %1689 = vmatpush2.bf16.msra.mxu0 0
        %1690 = vmatprep.subr.bf16.mxu0 0
        %1691 = vmatpush2.bf16.msra.mxu0 0
        %1692 = vmatprep.subr.bf16.mxu0 0
        %1693 = vmatpush2.bf16.msra.mxu0 0
        %1694 = vmatprep.subr.bf16.mxu0 0
        %1695 = vmatpush2.bf16.msra.mxu0 0
        %1696 = vmatprep.subr.bf16.mxu0 0
        %1697 = vmatpush2.bf16.msra.mxu0 0
        %1698 = vmatprep.subr.bf16.mxu0 0
        %1699 = vmatpush2.bf16.msra.mxu0 0
        %1700 = vmatprep.subr.bf16.mxu0 0
        %1701 = vmatpush2.bf16.msra.mxu0 0
        %1702 = vmatprep.subr.bf16.mxu0 0
        %1703 = vmatpush2.bf16.msra.mxu0 0
        %1704 = vmatprep.mubr.bf16.mxu0 0
        %1705 = vmatmul.mubr.bf16.gmra.mxu0 %v1667
        %v1706 = vpop.f32.mrf.mxu0
        %v1707 = vadd.f32 0.0, %v1706
        %v1708 = vpop.f32.mrf.mxu0
        %v1709 = vpop.f32.mrf.mxu0
        %v1710 = vpop.f32.mrf.mxu0
        %1711 = vdwg.mxu0
        %v1713 = vsel %vm1224, %v1659, 0
        %v1716 = vsel %vm1476, %v1663, 0
        %1718 = vmatprep.subr.bf16.mxu0 0
        %1719 = vmatpush1.bf16.msra.mxu0 0
        %1720 = vmatprep.subr.bf16.mxu0 0
        %1721 = vmatpush1.bf16.msra.mxu0 0
        %1722 = vmatprep.subr.bf16.mxu0 0
        %1723 = vmatpush1.bf16.msra.mxu0 0
        %1724 = vmatprep.subr.bf16.mxu0 0
        %1725 = vmatpush1.bf16.msra.mxu0 0
        %1726 = vmatprep.subr.bf16.mxu0 0
        %1727 = vmatpush1.bf16.msra.mxu0 0
        %1728 = vmatprep.subr.bf16.mxu0 0
        %1729 = vmatpush1.bf16.msra.mxu0 0
        %1730 = vmatprep.subr.bf16.mxu0 0
        %1731 = vmatpush1.bf16.msra.mxu0 0
        %1732 = vmatprep.subr.bf16.mxu0 0
        %1733 = vmatpush1.bf16.msra.mxu0 %v1716
        %1734 = vmatprep.subr.bf16.mxu0 0
        %1735 = vmatpush2.bf16.msra.mxu0 0
        %1736 = vmatprep.subr.bf16.mxu0 0
        %1737 = vmatpush2.bf16.msra.mxu0 0
        %1738 = vmatprep.subr.bf16.mxu0 0
        %1739 = vmatpush2.bf16.msra.mxu0 0
        %1740 = vmatprep.subr.bf16.mxu0 0
        %1741 = vmatpush2.bf16.msra.mxu0 0
        %1742 = vmatprep.subr.bf16.mxu0 0
        %1743 = vmatpush2.bf16.msra.mxu0 0
        %1744 = vmatprep.subr.bf16.mxu0 0
        %1745 = vmatpush2.bf16.msra.mxu0 0
        %1746 = vmatprep.subr.bf16.mxu0 0
        %1747 = vmatpush2.bf16.msra.mxu0 0
        %1748 = vmatprep.subr.bf16.mxu0 0
        %1749 = vmatpush2.bf16.msra.mxu0 0
        %1750 = vmatprep.mubr.bf16.mxu0 0
        %1751 = vmatmul.mubr.bf16.gmra.mxu0 %v1713
        %v1752 = vpop.f32.mrf.mxu0
        %v1753 = vadd.f32 0.0, %v1752
        %v1754 = vpop.f32.mrf.mxu0
        %v1755 = vpop.f32.mrf.mxu0
        %v1756 = vpop.f32.mrf.mxu0
        %1757 = vdwg.mxu0
        %v1759 = vsel %vm1224, %v1660, 0
        %v1762 = vsel %vm1476, %v1664, 0
        %1764 = vmatprep.subr.bf16.mxu0 0
        %1765 = vmatpush1.bf16.msra.mxu0 0
        %1766 = vmatprep.subr.bf16.mxu0 0
        %1767 = vmatpush1.bf16.msra.mxu0 0
        %1768 = vmatprep.subr.bf16.mxu0 0
        %1769 = vmatpush1.bf16.msra.mxu0 0
        %1770 = vmatprep.subr.bf16.mxu0 0
        %1771 = vmatpush1.bf16.msra.mxu0 0
        %1772 = vmatprep.subr.bf16.mxu0 0
        %1773 = vmatpush1.bf16.msra.mxu0 0
        %1774 = vmatprep.subr.bf16.mxu0 0
        %1775 = vmatpush1.bf16.msra.mxu0 0
        %1776 = vmatprep.subr.bf16.mxu0 0
        %1777 = vmatpush1.bf16.msra.mxu0 0
        %1778 = vmatprep.subr.bf16.mxu0 0
        %1779 = vmatpush1.bf16.msra.mxu0 %v1762
        %1780 = vmatprep.subr.bf16.mxu0 0
        %1781 = vmatpush2.bf16.msra.mxu0 0
        %1782 = vmatprep.subr.bf16.mxu0 0
        %1783 = vmatpush2.bf16.msra.mxu0 0
        %1784 = vmatprep.subr.bf16.mxu0 0
        %1785 = vmatpush2.bf16.msra.mxu0 0
        %1786 = vmatprep.subr.bf16.mxu0 0
        %1787 = vmatpush2.bf16.msra.mxu0 0
        %1788 = vmatprep.subr.bf16.mxu0 0
        %1789 = vmatpush2.bf16.msra.mxu0 0
        %1790 = vmatprep.subr.bf16.mxu0 0
        %1791 = vmatpush2.bf16.msra.mxu0 0
        %1792 = vmatprep.subr.bf16.mxu0 0
        %1793 = vmatpush2.bf16.msra.mxu0 0
        %1794 = vmatprep.subr.bf16.mxu0 0
        %1795 = vmatpush2.bf16.msra.mxu0 0
        %1796 = vmatprep.mubr.bf16.mxu0 0
        %1797 = vmatmul.mubr.bf16.gmra.mxu0 %v1759
        %v1798 = vpop.f32.mrf.mxu0
        %v1799 = vadd.f32 0.0, %v1798
        %v1800 = vpop.f32.mrf.mxu0
        %v1801 = vpop.f32.mrf.mxu0
        %v1802 = vpop.f32.mrf.mxu0
        %1803 = vdwg.mxu0
        %v1805 = vsel %vm1224, %v1661, 0
        %v1808 = vsel %vm1476, %v1665, 0
        %1810 = vmatprep.subr.bf16.mxu0 0
        %1811 = vmatpush1.bf16.msra.mxu0 0
        %1812 = vmatprep.subr.bf16.mxu0 0
        %1813 = vmatpush1.bf16.msra.mxu0 0
        %1814 = vmatprep.subr.bf16.mxu0 0
        %1815 = vmatpush1.bf16.msra.mxu0 0
        %1816 = vmatprep.subr.bf16.mxu0 0
        %1817 = vmatpush1.bf16.msra.mxu0 0
        %1818 = vmatprep.subr.bf16.mxu0 0
        %1819 = vmatpush1.bf16.msra.mxu0 0
        %1820 = vmatprep.subr.bf16.mxu0 0
        %1821 = vmatpush1.bf16.msra.mxu0 0
        %1822 = vmatprep.subr.bf16.mxu0 0
        %1823 = vmatpush1.bf16.msra.mxu0 0
        %1824 = vmatprep.subr.bf16.mxu0 0
        %1825 = vmatpush1.bf16.msra.mxu0 %v1808
        %1826 = vmatprep.subr.bf16.mxu0 0
        %1827 = vmatpush2.bf16.msra.mxu0 0
        %1828 = vmatprep.subr.bf16.mxu0 0
        %1829 = vmatpush2.bf16.msra.mxu0 0
        %1830 = vmatprep.subr.bf16.mxu0 0
        %1831 = vmatpush2.bf16.msra.mxu0 0
        %1832 = vmatprep.subr.bf16.mxu0 0
        %1833 = vmatpush2.bf16.msra.mxu0 0
        %1834 = vmatprep.subr.bf16.mxu0 0
        %1835 = vmatpush2.bf16.msra.mxu0 0
        %1836 = vmatprep.subr.bf16.mxu0 0
        %1837 = vmatpush2.bf16.msra.mxu0 0
        %1838 = vmatprep.subr.bf16.mxu0 0
        %1839 = vmatpush2.bf16.msra.mxu0 0
        %1840 = vmatprep.subr.bf16.mxu0 0
        %1841 = vmatpush2.bf16.msra.mxu0 0
        %1842 = vmatprep.mubr.bf16.mxu0 0
        %1843 = vmatmul.mubr.bf16.gmra.mxu0 %v1805
        %v1844 = vpop.f32.mrf.mxu0
        %v1845 = vadd.f32 0.0, %v1844
        %v1846 = vpop.f32.mrf.mxu0
        %v1847 = vpop.f32.mrf.mxu0
        %v1848 = vpop.f32.mrf.mxu0
        %1849 = vdwg.mxu0
        %v1850 = vsel %vm610, %v1707, 0.0
        %v1851 = vsel %vm610, %v1753, 0.0
        %v1852 = vadd.f32 %v1850, %v1851
        %v1853 = vsel %vm610, %v1799, 0.0
        %v1854 = vadd.f32 %v1852, %v1853
        %v1855 = vsel %vm610, %v1845, 0.0
        %v1856 = vadd.f32 %v1854, %v1855
        %v1857 = vadd.f32 %v1856, %v590
        %v1858 = vld [vmem:[%s8] sm:$0x1]
        %v1859 = vld [vmem:[%s9] sm:$0x1]
        %v1860 = vsel %vm610, %v1857, 0.0
        %1861 = vadd.xlane.f32.xlu0 %v1860
        %v1862 = vpop.xlane.xlu0 %1861
        %v1863 = vrcp.pop 32.0
        %v1864 = vmul.f32 %v1862, %v1863
        %v1865 = vsub.f32 %v1857, %v1864
        %v1866 = vmul.f32 %v1865, %v1865
        %v1867 = vsel %vm610, %v1866, 0.0
        %1868 = vadd.xlane.f32.xlu0 %v1867
        %v1869 = vpop.xlane.xlu0 %1868
        %v1870 = vmul.f32 %v1869, 0.032258064
        %v1871 = vrsqrt.pop %v1870
        %v1872 = vmul.f32 %v1870, %v1871
        %vm1873 = vcmp.eq.f32.partialorder %v1870, inf
        %v1874 = vsel %vm1873, %v1870, %v1872
        %vm1875 = vcmp.eq.f32.partialorder %v1870, 0.0
        %v1876 = vand.u32 %v1870, 2147483648
        %v1877 = vsel %vm1875, %v1876, %v1874
        %v1878 = vadd.f32 %v1877, 0.001
        %v1879 = vrcp.pop %v1878
        %v1880 = vmul.f32 %v1865, %v1879
        %v1882 = vlaneseq
        %v1883 = vshrl.u32 %v1882, 7
        %v1884 = vsub.s32 0, %v1883
        %v1885 = vrot.slane %v1858, %v1884
        %v1887 = vmul.f32 %v1880, %v1885
        %v1889 = vlaneseq
        %v1890 = vshrl.u32 %v1889, 7
        %v1891 = vsub.s32 0, %v1890
        %v1892 = vrot.slane %v1859, %v1891
        %v1894 = vadd.f32 %v1887, %v1892
        %1895 = vst.msk [vmem:[%s574] sm:$0xff] %vm610, %v1894
        %s1896 = sand.u32 %s293, 1
        %s1897 = scalar_lea.sflag [#allocation4], %s1896
        %s1898 = sand.u32 %s293, 1
        %s1899 = smul.addr %s1898, 8
        %s1900 = scalar_lea.vmem [#allocation14], %s1899
        %s1901 = sand.u32 %s321, 1
        %s1902 = scalar_lea.sflag [#allocation16], %s1901
        %s1903 = sand.u32 %s321, 1
        %s1904 = smul.addr %s1903, 32
        %s1905 = scalar_lea.vmem [#allocation15], %s1904
        // Predicated region
        $region89: #{tpu_custom_call.1} parent=59 // pred_check
          %p1906 = pneg %p303
        $region90: #{tpu_custom_call.1} parent=59 // pred_check_branch
          %1908 = sbr.rel (%p1906) target = $region92
        $region91: #{tpu_custom_call.1} parent=59 // pred_region
          %s1910 = ssub.s32 128, 128
          %1911 = vsyncadd %s1897, %s1910
          %s1912 = sadd.s32 %s42, %s41
          %s1913 = smul.addr %s1912, 128
          %s1914 = scalar_lea.hbm %s10, %s1913
          %s1916 = sshll.u32 %s1900, 4
          %s1917 = int_to_ptr.vmem [resolvable:$true] %s1916
          %1919 = dma.vmem_to_hbm [thread:$0]  %s1917, 128, %s1914, %s1897
        $region92: #{tpu_custom_call.1} parent=59 // pred_fallthru
          _
        // Predicated region
        $region93: #{tpu_custom_call.1} parent=59 // pred_check
          %p1920 = pneg %p331
        $region94: #{tpu_custom_call.1} parent=59 // pred_check_branch
          %1922 = sbr.rel (%p1920) target = $region96
        $region95: #{tpu_custom_call.1} parent=59 // pred_region
          %s1924 = ssub.s32 512, 512
          %1925 = vsyncadd %s1902, %s1924
          %s1926 = sadd.s32 %s42, %s41
          %s1927 = smul.addr %s1926, 128
          %s1928 = scalar_lea.hbm %s11, %s1927
          %s1929 = sshll.u32 %s1905, 4
          %s1930 = int_to_ptr.vmem [resolvable:$true] %s1929
          %1935 = dma.vmem_to_hbm [thread:$0]  %s1930, 512, %s1928, %s1902, 128, 256, 8
        $region96: #{tpu_custom_call.1} parent=59 // pred_fallthru
          _
      $region60: #{tpu_custom_call.1} parent=5 // pred_fallthru
        _
      %p1936 = scmp.le.s32.totalorder 2, %s32
      // Predicated region
      $region97: #{tpu_custom_call.1} parent=5 // pred_check
        %p1937 = pneg %p1936
      $region98: #{tpu_custom_call.1} parent=5 // pred_check_branch
        %1939 = sbr.rel (%p1937) target = $region100
      $region99: #{tpu_custom_call.1} parent=5 // pred_region
        %s1940 = ssub.s32 %s32, 2
        // Predicated region
        $region101: #{tpu_custom_call.1} parent=99 // pred_check
          %p1941 = pneg %p309
        $region102: #{tpu_custom_call.1} parent=99 // pred_check_branch
          %1943 = sbr.rel (%p1941) target = $region104
        $region103: #{tpu_custom_call.1} parent=99 // pred_region
          %s1944 = sand.u32 %s294, 1
          %s1945 = scalar_lea.sflag [#allocation4], %s1944
          %s1946 = sand.u32 %s294, 1
          %s1947 = smul.addr %s1946, 8
          %s1948 = scalar_lea.vmem [#allocation14], %s1947
          %1949 = dma.done %s1945, 128
        $region104: #{tpu_custom_call.1} parent=99 // pred_fallthru
          _
        // Predicated region
        $region105: #{tpu_custom_call.1} parent=99 // pred_check
          %p1950 = pneg %p337
        $region106: #{tpu_custom_call.1} parent=99 // pred_check_branch
          %1952 = sbr.rel (%p1950) target = $region108
        $region107: #{tpu_custom_call.1} parent=99 // pred_region
          %s1953 = sand.u32 %s322, 1
          %s1954 = scalar_lea.sflag [#allocation16], %s1953
          %s1955 = sand.u32 %s322, 1
          %s1956 = smul.addr %s1955, 32
          %s1957 = scalar_lea.vmem [#allocation15], %s1956
          %1958 = dma.done %s1954, 512
        $region108: #{tpu_custom_call.1} parent=99 // pred_fallthru
          _
      $region100: #{tpu_custom_call.1} parent=5 // pred_fallthru
        _
    $region6: #{tpu_custom_call.1} parent=1 // loop_footer
      %s36 = sadd.s32 1, %s32
    $region7: #{tpu_custom_call.1} parent=1 // loop_footer_branch
      %31 = sbr.rel target = $region3
    $region8: #{tpu_custom_call.1} parent=1 // loop_exit
      _
    %1959 = vsyncpa [#allocation3], 1
    %s1960 = scalar_lea.sflag [#allocation3], 1
    %1961 = vsyncpa %s1960, 1
    %1962 = vsyncpa [#allocation6], 1
    %s1963 = scalar_lea.sflag [#allocation6], 1
    %1964 = vsyncpa %s1963, 1
    %1965 = vsyncpa [#allocation9], 1
    %1966 = vsyncpa [#allocation12], 1
    %1967 = vsyncpa [#allocation4], 1
    %s1968 = scalar_lea.sflag [#allocation4], 1
    %1969 = vsyncpa %s1968, 1
    %1970 = vsyncpa [#allocation16], 1
    %s1971 = scalar_lea.sflag [#allocation16], 1
    %1972 = vsyncpa %s1971, 1

</llo_original>
